<compile_context>
chip_gen: v6e
topology: v6e:2x2x1
jax: 0.10.0
libtpu: 0.0.40
codegen_flags: <defaults>
</compile_context>

<pallas_src>
import functools
import math

import jax
import jax.numpy as jnp
from jax.experimental import pallas as pl
from jax.experimental.pallas import tpu as pltpu


VMEM_LIMIT = 48 * 1024 * 1024  # headroom under v7x's 64 MiB physical VMEM


def _round_up(x, m):
    return (x + m - 1) // m * m


def _pick_bt(B, L, *, target_rows=512, max_rows=4096):
    """Largest divisor of B such that Bt*L stays VMEM-friendly (aim >= 512 rows)."""
    best = 1
    for bt in range(1, B + 1):
        if B % bt != 0:
            continue
        if bt * L > max_rows:
            break
        best = bt
        if bt * L >= target_rows:
            break
    return best


# ----------------------------------------------------------------------------
# Pallas kernels
# ----------------------------------------------------------------------------
def bert_layers_kernel(
    x_ref, keep_ref,
    wqkv_ref, bqkv_ref, wo_ref, bo_ref,
    g1_ref, be1_ref, w1_ref, b1_ref, w2_ref, b2_ref, g2_ref, be2_ref,
    o_ref,
    xs_ref,
    *, num_heads, h_actual, dk_actual,
):
    f32 = jnp.float32
    bf16 = jnp.bfloat16

    l_idx = pl.program_id(1)

    # Layer 0: load the embedded activations into the resident f32 carry.
    @pl.when(l_idx == 0)
    def _():
        xs_ref[...] = x_ref[...]

    x = xs_ref[...]                               # (Bt, L, Hp) f32 carry
    Bt, L, Hp = x.shape
    M = Bt * L
    x2 = x.reshape(M, Hp)

    keep_b = keep_ref[...] > 0.0                  # (Bt, 1, L): key token > 0

    # Hoisted masks (built once per grid step, reused below).
    col_valid = jax.lax.broadcasted_iota(jnp.int32, (1, Hp), 1) < h_actual
    lane3 = jax.lax.broadcasted_iota(jnp.int32, (1, 1, Hp), 2)

    def layernorm(v, gamma, beta):
        # Matches the module's custom LayerNorm: mean over the true hidden
        # width, *unbiased* std, eps added to std (not var).
        mean = jnp.sum(v, axis=-1, keepdims=True) * (1.0 / h_actual)
        d = jnp.where(col_valid, v - mean, 0.0)
        var = jnp.sum(d * d, axis=-1, keepdims=True) * (1.0 / (h_actual - 1))
        std = jnp.sqrt(var)
        return gamma * (d / (std + 1e-6)) + beta

    # ---- multi-head self attention: fused lane-dense QKV projection --------
    qkv = jnp.dot(x2.astype(bf16), wqkv_ref[0],
                  preferred_element_type=f32) + bqkv_ref[0]       # (M, 3*Hp)
    q = qkv[:, :Hp].reshape(Bt, L, Hp)
    k = qkv[:, Hp:2 * Hp].reshape(Bt, L, Hp)
    v = qkv[:, 2 * Hp:].reshape(Bt, L, Hp)
    kb = k.astype(bf16)

    scale = 1.0 / math.sqrt(dk_actual)
    ctx = jnp.zeros((Bt, L, Hp), f32)
    for h in range(num_heads):
        sel = jnp.logical_and(lane3 >= h * dk_actual,
                              lane3 < (h + 1) * dk_actual)        # (1, 1, Hp)
        # Masking Q's columns to head h makes the full-width contraction equal
        # q_h . k_h (no per-head slicing / d_k padding needed).
        qh = jnp.where(sel, q, 0.0).astype(bf16)
        s = jnp.einsum("bqd,bkd->bqk", qh, kb,
                       preferred_element_type=f32) * scale        # (Bt, L, L)
        s = jnp.where(keep_b, s, -1e9)                            # masked_fill
        m = jnp.max(s, axis=-1, keepdims=True)
        p = jnp.exp(s - m)
        p = p / jnp.sum(p, axis=-1, keepdims=True)
        # Head-h context lands only in head h's columns -> summing over heads
        # rebuilds the concatenated context for free.
        vh = jnp.where(sel, v, 0.0).astype(bf16)
        ctx = ctx + jnp.einsum("bqk,bkd->bqd", p.astype(bf16), vh,
                               preferred_element_type=f32)

    attn = jnp.dot(ctx.reshape(M, Hp).astype(bf16), wo_ref[0],
                   preferred_element_type=f32) + bo_ref[0]        # (M, Hp)

    h1 = layernorm(x2 + attn, g1_ref[0], be1_ref[0])

    # ---- position-wise feed forward (tanh-GELU) -----------------------------
    ff = jnp.dot(h1.astype(bf16), w1_ref[0],
                 preferred_element_type=f32) + b1_ref[0]          # (M, Fp)
    c = math.sqrt(2.0 / math.pi)
    ff = 0.5 * ff * (1.0 + jnp.tanh(c * (ff + 0.044715 * ff * ff * ff)))
    ff = jnp.dot(ff.astype(bf16), w2_ref[0],
                 preferred_element_type=f32) + b2_ref[0]          # (M, Hp)

    out = layernorm(h1 + ff, g2_ref[0], be2_ref[0])

    xs_ref[...] = out.reshape(Bt, L, Hp)

    @pl.when(l_idx == pl.num_programs(1) - 1)
    def _():
        o_ref[...] = out.reshape(Bt, L, Hp).astype(o_ref.dtype)


def out_proj_kernel(x_ref, w_ref, b_ref, o_ref):
    # x: (tm, Hp) bf16, w: (Hp, tn) bf16, b: (1, tn) f32
    o_ref[...] = (jnp.dot(x_ref[...], w_ref[...],
                          preferred_element_type=jnp.float32) + b_ref[...])


# ----------------------------------------------------------------------------
# Wrappers calling pallas_call
# ----------------------------------------------------------------------------
def transformer_layers(x, keep, lp, *, Bt, num_heads, h_actual, dk_actual):
    B, L, Hp = x.shape
    n_layers = lp["wqkv"].shape[0]
    F3 = lp["wqkv"].shape[2]
    Fp = lp["w1"].shape[2]
    grid = (B // Bt, n_layers)

    act_map = lambda b, l: (b, 0, 0)   # resident per batch tile (no refetch over l)
    w_map = lambda b, l: (l, 0, 0)     # stream layer l's weights

    in_specs = [
        pl.BlockSpec((Bt, L, Hp), act_map),      # x (embedded activations)
        pl.BlockSpec((Bt, 1, L), act_map),       # key-keep mask
        pl.BlockSpec((1, Hp, F3), w_map),        # wqkv
        pl.BlockSpec((1, 1, F3), w_map),         # bqkv
        pl.BlockSpec((1, Hp, Hp), w_map),        # wo
        pl.BlockSpec((1, 1, Hp), w_map),         # bo
        pl.BlockSpec((1, 1, Hp), w_map),         # ln1 gamma
        pl.BlockSpec((1, 1, Hp), w_map),         # ln1 beta
        pl.BlockSpec((1, Hp, Fp), w_map),        # w1
        pl.BlockSpec((1, 1, Fp), w_map),         # b1
        pl.BlockSpec((1, Fp, Hp), w_map),        # w2
        pl.BlockSpec((1, 1, Hp), w_map),         # b2
        pl.BlockSpec((1, 1, Hp), w_map),         # ln2 gamma
        pl.BlockSpec((1, 1, Hp), w_map),         # ln2 beta
    ]

    return pl.pallas_call(
        functools.partial(bert_layers_kernel, num_heads=num_heads,
                          h_actual=h_actual, dk_actual=dk_actual),
        out_shape=jax.ShapeDtypeStruct((B, L, Hp), jnp.bfloat16),
        grid_spec=pltpu.PrefetchScalarGridSpec(
            num_scalar_prefetch=0,
            grid=grid,
            in_specs=in_specs,
            out_specs=pl.BlockSpec((Bt, L, Hp), act_map),
            scratch_shapes=[pltpu.VMEM((Bt, L, Hp), jnp.float32)]),
        compiler_params=pltpu.CompilerParams(
            dimension_semantics=("parallel", "arbitrary"),
            vmem_limit_bytes=VMEM_LIMIT),
    )(x, keep, lp["wqkv"], lp["bqkv"], lp["wo"], lp["bo"],
      lp["g1"], lp["be1"], lp["w1"], lp["b1"],
      lp["w2"], lp["b2"], lp["g2"], lp["be2"])


def out_projection(x, w, b, *, tm, tn):
    BLp, Hp = x.shape
    Vp = w.shape[1]
    grid = (BLp // tm, Vp // tn)
    return pl.pallas_call(
        out_proj_kernel,
        out_shape=jax.ShapeDtypeStruct((BLp, Vp), jnp.float32),
        grid_spec=pltpu.PrefetchScalarGridSpec(
            num_scalar_prefetch=0,
            grid=grid,
            in_specs=[pl.BlockSpec((tm, Hp), lambda i, j: (i, 0)),
                      pl.BlockSpec((Hp, tn), lambda i, j: (0, j)),
                      pl.BlockSpec((1, tn), lambda i, j: (0, j))],
            out_specs=pl.BlockSpec((tm, tn), lambda i, j: (i, j))),
        compiler_params=pltpu.CompilerParams(
            dimension_semantics=("parallel", "parallel"),
            vmem_limit_bytes=VMEM_LIMIT),
    )(x, w, b)


# ----------------------------------------------------------------------------
# Model (padded parameter construction + forward glue)
# ----------------------------------------------------------------------------
def init_params(key, *, item_num, hidden, maxlen, n_layers, heads):
    assert hidden % heads == 0 and hidden > 1
    vocab_size = item_num + 2           # token embedding vocab
    out_dim = item_num + 1              # output projection
    d_ff = hidden * 4

    Hp = _round_up(hidden, 128)         # lane-aligned hidden
    Fp = _round_up(d_ff, 128)           # lane-aligned FFN dim
    Vp = _round_up(out_dim, 128)        # lane-aligned vocab output

    keys = iter(jax.random.split(key, 16 + 12 * n_layers))

    def nrm(shape, scale=0.02):
        return (scale * jax.random.normal(next(keys), shape)).astype(jnp.float32)

    def padc(a, width):                 # zero-pad last dim
        return jnp.pad(a, [(0, 0)] * (a.ndim - 1) + [(0, width - a.shape[-1])])

    def padrc(a, rows, cols):           # zero-pad a 2-D matrix
        return jnp.pad(a, ((0, rows - a.shape[0]), (0, cols - a.shape[1])))

    tok = nrm((vocab_size, hidden)).at[0].set(0.0)     # padding_idx = 0
    tok_emb = padc(tok, Hp)
    pos_emb = padc(nrm((maxlen, hidden)), Hp)

    wqkv_l, bqkv_l, wo_l, bo_l = [], [], [], []
    g1_l, be1_l, w1_l, b1_l = [], [], [], []
    w2_l, b2_l, g2_l, be2_l = [], [], [], []
    for _ in range(n_layers):
        wq = padrc(nrm((hidden, hidden)), Hp, Hp)
        wk = padrc(nrm((hidden, hidden)), Hp, Hp)
        wv = padrc(nrm((hidden, hidden)), Hp, Hp)
        wqkv_l.append(jnp.concatenate([wq, wk, wv], axis=1).astype(jnp.bfloat16))
        bq = padc(nrm((1, hidden)), Hp)
        bk = padc(nrm((1, hidden)), Hp)
        bv = padc(nrm((1, hidden)), Hp)
        bqkv_l.append(jnp.concatenate([bq, bk, bv], axis=1))

        wo_l.append(padrc(nrm((hidden, hidden)), Hp, Hp).astype(jnp.bfloat16))
        bo_l.append(padc(nrm((1, hidden)), Hp))

        g1_l.append(padc(jnp.ones((1, hidden), jnp.float32), Hp))
        be1_l.append(jnp.zeros((1, Hp), jnp.float32))
        w1_l.append(padrc(nrm((hidden, d_ff)), Hp, Fp).astype(jnp.bfloat16))
        b1_l.append(padc(nrm((1, d_ff)), Fp))
        w2_l.append(padrc(nrm((d_ff, hidden)), Fp, Hp).astype(jnp.bfloat16))
        b2_l.append(padc(nrm((1, hidden)), Hp))
        g2_l.append(padc(jnp.ones((1, hidden), jnp.float32), Hp))
        be2_l.append(jnp.zeros((1, Hp), jnp.float32))

    layers = dict(
        wqkv=jnp.stack(wqkv_l), bqkv=jnp.stack(bqkv_l),
        wo=jnp.stack(wo_l), bo=jnp.stack(bo_l),
        g1=jnp.stack(g1_l), be1=jnp.stack(be1_l),
        w1=jnp.stack(w1_l), b1=jnp.stack(b1_l),
        w2=jnp.stack(w2_l), b2=jnp.stack(b2_l),
        g2=jnp.stack(g2_l), be2=jnp.stack(be2_l))

    w_out = padrc(nrm((hidden, out_dim)), Hp, Vp).astype(jnp.bfloat16)
    b_out = padc(nrm((1, out_dim)), Vp)

    return dict(tok_emb=tok_emb, pos_emb=pos_emb, layers=layers,
                w_out=w_out, b_out=b_out, out_dim=out_dim)


def bertrec_forward(tokens, params, *, heads, hidden):
    """tokens: int32 [B, L] -> logits float32 [B, L, item_num + 1]."""
    B, L = tokens.shape
    Hp = params["tok_emb"].shape[1]
    d_k = hidden // heads

    # Key-keep vector (B, 1, L); the (B, 1, L, L) mask is never materialized.
    keep = (tokens > 0).astype(jnp.float32)[:, None, :]

    # Embedding glue (lookup + positional add); dropout is identity in eval.
    x = jnp.take(params["tok_emb"], tokens, axis=0) + params["pos_emb"][None, :L]
    x = x.astype(jnp.float32)

    # All transformer layers in one pallas_call (layer axis on the grid).
    Bt = _pick_bt(B, L)
    h = transformer_layers(x, keep, params["layers"], Bt=Bt,
                           num_heads=heads, h_actual=hidden, dk_actual=d_k)
    # h: (B, L, Hp) bf16

    # Tiled, lane-aligned vocab projection on bf16 activations.
    BL = B * L
    xf = h.reshape(BL, Hp)
    tm = 512 if BL >= 512 else _round_up(BL, 8)
    BLp = _round_up(BL, tm)
    if BLp != BL:
        xf = jnp.pad(xf, ((0, BLp - BL), (0, 0)))
    Vp = params["w_out"].shape[1]
    tn = 512 if Vp % 512 == 0 else (256 if Vp % 256 == 0 else 128)

    logits_p = out_projection(xf, params["w_out"], params["b_out"], tm=tm, tn=tn)
    out_dim = params["out_dim"]
    return logits_p[:BL, :out_dim].reshape(B, L, out_dim)


# ----------------------------------------------------------------------------
if __name__ == "__main__":
    # Small config consistent with the module's constructor arguments.
    B = 2
    maxlen = 8
    hidden = 32
    n_layers = 2
    heads = 2
    item_num = 50            # vocab = item_num + 2 = 52; output dim = 51

    key = jax.random.PRNGKey(0)
    k_param, k_tok = jax.random.split(key)

    params = init_params(k_param, item_num=item_num, hidden=hidden,
                         maxlen=maxlen, n_layers=n_layers, heads=heads)

    # Token ids in [0, item_num + 1]; zeros act as padding.
    tokens = jax.random.randint(k_tok, (B, maxlen), 0, item_num + 2,
                                dtype=jnp.int32)

    logits = bertrec_forward(tokens, params, heads=heads, hidden=hidden)
    logits = jax.block_until_ready(logits)

    assert logits.shape == (B, maxlen, item_num + 1)
    assert bool(jnp.all(jnp.isfinite(logits)))
    print("KERNEL_OK")
</pallas_src>

<mosaic_0001>
module attributes {stable_mosaic.version = 11 : i64} {
  func.func @bert_layers_kernel(%arg0: i32, %arg1: i32, %arg2: memref<2x8x128xf32, #tpu.memory_space<vmem>>, %arg3: memref<2x1x8xf32, #tpu.memory_space<vmem>>, %arg4: memref<1x128x384xbf16, #tpu.memory_space<vmem>>, %arg5: memref<1x1x384xf32, #tpu.memory_space<vmem>>, %arg6: memref<1x128x128xbf16, #tpu.memory_space<vmem>>, %arg7: memref<1x1x128xf32, #tpu.memory_space<vmem>>, %arg8: memref<1x1x128xf32, #tpu.memory_space<vmem>>, %arg9: memref<1x1x128xf32, #tpu.memory_space<vmem>>, %arg10: memref<1x128x128xbf16, #tpu.memory_space<vmem>>, %arg11: memref<1x1x128xf32, #tpu.memory_space<vmem>>, %arg12: memref<1x128x128xbf16, #tpu.memory_space<vmem>>, %arg13: memref<1x1x128xf32, #tpu.memory_space<vmem>>, %arg14: memref<1x1x128xf32, #tpu.memory_space<vmem>>, %arg15: memref<1x1x128xf32, #tpu.memory_space<vmem>>, %arg16: memref<2x8x128xbf16, #tpu.memory_space<vmem>>, %arg17: memref<2x8x128xf32, #tpu.memory_space<vmem>>) attributes {dimension_semantics = [#tpu.dimension_semantics<parallel>, #tpu.dimension_semantics<arbitrary>], iteration_bounds = array<i64: 1, 2>, scalar_prefetch = 0 : i64, scratch_operands = 1 : i64, tpu.core_type = #tpu.core_type<tc>, window_params = [{transform_indices = @transform_0, window_bounds = array<i64: 2, 8, 128>}, {transform_indices = @transform_1, window_bounds = array<i64: 2, 1, 8>}, {transform_indices = @transform_2, window_bounds = array<i64: 1, 128, 384>}, {transform_indices = @transform_3, window_bounds = array<i64: 1, 1, 384>}, {transform_indices = @transform_4, window_bounds = array<i64: 1, 128, 128>}, {transform_indices = @transform_5, window_bounds = array<i64: 1, 1, 128>}, {transform_indices = @transform_6, window_bounds = array<i64: 1, 1, 128>}, {transform_indices = @transform_7, window_bounds = array<i64: 1, 1, 128>}, {transform_indices = @transform_8, window_bounds = array<i64: 1, 128, 128>}, {transform_indices = @transform_9, window_bounds = array<i64: 1, 1, 128>}, {transform_indices = @transform_10, window_bounds = array<i64: 1, 128, 128>}, {transform_indices = @transform_11, window_bounds = array<i64: 1, 1, 128>}, {transform_indices = @transform_12, window_bounds = array<i64: 1, 1, 128>}, {transform_indices = @transform_13, window_bounds = array<i64: 1, 1, 128>}, {transform_indices = @transform_14, window_bounds = array<i64: 2, 8, 128>}]} {
    %c0_i32 = arith.constant 0 : i32
    %0 = arith.cmpi eq, %arg1, %c0_i32 : i32
    %1 = arith.extui %0 : i1 to i32
    %c0_i32_0 = arith.constant 0 : i32
    %2 = arith.cmpi ne, %1, %c0_i32_0 : i32
    scf.if %2 {
      %c0_86 = arith.constant 0 : index
      %c0_87 = arith.constant 0 : index
      %c0_88 = arith.constant 0 : index
      %197 = vector.load %arg2[%c0_86, %c0_87, %c0_88] : memref<2x8x128xf32, #tpu.memory_space<vmem>>, vector<2x8x128xf32>
      %c0_89 = arith.constant 0 : index
      %c0_90 = arith.constant 0 : index
      %c0_91 = arith.constant 0 : index
      %198 = vector.load %arg17[%c0_89, %c0_90, %c0_91] : memref<2x8x128xf32, #tpu.memory_space<vmem>>, vector<2x8x128xf32>
      tpu.vector_store %arg17[%c0_89, %c0_90, %c0_91], %197 {strides = array<i32>} : memref<2x8x128xf32, #tpu.memory_space<vmem>>, vector<2x8x128xf32>,
    } else {
    }
    %c0 = arith.constant 0 : index
    %c0_1 = arith.constant 0 : index
    %c0_2 = arith.constant 0 : index
    %3 = vector.load %arg17[%c0, %c0_1, %c0_2] : memref<2x8x128xf32, #tpu.memory_space<vmem>>, vector<2x8x128xf32>
    %4 = vector.shape_cast %3 : vector<2x8x128xf32> to vector<16x128xf32>
    %c0_3 = arith.constant 0 : index
    %c0_4 = arith.constant 0 : index
    %c0_5 = arith.constant 0 : index
    %5 = vector.load %arg3[%c0_3, %c0_4, %c0_5] : memref<2x1x8xf32, #tpu.memory_space<vmem>>, vector<2x1x8xf32>
    %cst = arith.constant 0.000000e+00 : f32
    %6 = vector.broadcast %cst : f32 to vector<2x1x8xf32>
    %7 = arith.cmpf ogt, %5, %6 : vector<2x1x8xf32>
    %8 = tpu.iota {dimensions = array<i32: 1>} : vector<1x128xi32>
    %c32_i32 = arith.constant 32 : i32
    %9 = vector.broadcast %c32_i32 : i32 to vector<1x128xi32>
    %10 = arith.cmpi slt, %8, %9 : vector<1x128xi32>
    %11 = tpu.iota {dimensions = array<i32: 2>} : vector<1x1x128xi32>
    %12 = arith.truncf %4 : vector<16x128xf32> to vector<16x128xbf16>
    %c0_6 = arith.constant 0 : index
    %c0_7 = arith.constant 0 : index
    %c0_8 = arith.constant 0 : index
    %13 = vector.load %arg4[%c0_6, %c0_7, %c0_8] : memref<1x128x384xbf16, #tpu.memory_space<vmem>>, vector<1x128x384xbf16>
    %14 = vector.shape_cast %13 : vector<1x128x384xbf16> to vector<128x384xbf16>
    %cst_9 = arith.constant dense<0.000000e+00> : vector<16x384xf32>
    %15 = tpu.matmul %12, %14, %cst_9 {dimension_numbers = #tpu.dot_dimension_numbers<[1], [0], [0], [1], [0, 0, 1, 1], [], []>} : vector<16x128xbf16>, vector<128x384xbf16>, vector<16x384xf32> -> vector<16x384xf32>
    %c0_10 = arith.constant 0 : index
    %c0_11 = arith.constant 0 : index
    %c0_12 = arith.constant 0 : index
    %16 = vector.load %arg5[%c0_10, %c0_11, %c0_12] : memref<1x1x384xf32, #tpu.memory_space<vmem>>, vector<1x1x384xf32>
    %17 = vector.shape_cast %16 : vector<1x1x384xf32> to vector<1x384xf32>
    %18 = vector.broadcast %17 : vector<1x384xf32> to vector<16x384xf32>
    %19 = arith.addf %15, %18 : vector<16x384xf32>
    %20 = vector.extract_strided_slice %19 {offsets = [0, 0], sizes = [16, 128], strides = [1, 1]} : vector<16x384xf32> to vector<16x128xf32>
    %21 = vector.shape_cast %20 : vector<16x128xf32> to vector<2x8x128xf32>
    %22 = vector.extract_strided_slice %19 {offsets = [0, 128], sizes = [16, 128], strides = [1, 1]} : vector<16x384xf32> to vector<16x128xf32>
    %23 = vector.shape_cast %22 : vector<16x128xf32> to vector<2x8x128xf32>
    %24 = vector.extract_strided_slice %19 {offsets = [0, 256], sizes = [16, 128], strides = [1, 1]} : vector<16x384xf32> to vector<16x128xf32>
    %25 = vector.shape_cast %24 : vector<16x128xf32> to vector<2x8x128xf32>
    %26 = arith.truncf %23 : vector<2x8x128xf32> to vector<2x8x128xbf16>
    %cst_13 = arith.constant 0.000000e+00 : f32
    %27 = vector.broadcast %cst_13 : f32 to vector<2x8x128xf32>
    %c0_i32_14 = arith.constant 0 : i32
    %28 = vector.broadcast %c0_i32_14 : i32 to vector<1x1x128xi32>
    %29 = arith.cmpi sge, %11, %28 : vector<1x1x128xi32>
    %c16_i32 = arith.constant 16 : i32
    %30 = vector.broadcast %c16_i32 : i32 to vector<1x1x128xi32>
    %31 = arith.cmpi slt, %11, %30 : vector<1x1x128xi32>
    %32 = arith.andi %29, %31 : vector<1x1x128xi1>
    %cst_15 = arith.constant 0.000000e+00 : f32
    %33 = vector.shape_cast %32 : vector<1x1x128xi1> to vector<1x1x128xi1>
    %34 = vector.broadcast %33 : vector<1x1x128xi1> to vector<2x8x128xi1>
    %35 = vector.broadcast %cst_15 : f32 to vector<2x8x128xf32>
    %36 = arith.select %34, %21, %35 : vector<2x8x128xi1>, vector<2x8x128xf32>
    %37 = arith.truncf %36 : vector<2x8x128xf32> to vector<2x8x128xbf16>
    "tpu.trace_start"() <{level = 10 : i32, message = "bqd,bkd->bqk"}> : () -> ()
    %cst_16 = arith.constant dense<0.000000e+00> : vector<2x8x8xf32>
    %38 = tpu.matmul %37, %26, %cst_16 {dimension_numbers = #tpu.dot_dimension_numbers<[2], [2], [1], [1], [0, 0, 0, 1, 1, 1], [0], [0]>} : vector<2x8x128xbf16>, vector<2x8x128xbf16>, vector<2x8x8xf32> -> vector<2x8x8xf32>
    "tpu.trace_stop"() : () -> ()
    %cst_17 = arith.constant 2.500000e-01 : f32
    %39 = vector.broadcast %cst_17 : f32 to vector<2x8x8xf32>
    %40 = arith.mulf %38, %39 : vector<2x8x8xf32>
    %cst_18 = arith.constant -1.000000e+09 : f32
    %41 = vector.shape_cast %7 : vector<2x1x8xi1> to vector<2x1x8xi1>
    %42 = vector.broadcast %41 : vector<2x1x8xi1> to vector<2x8x8xi1>
    %43 = vector.broadcast %cst_18 : f32 to vector<2x8x8xf32>
    %44 = arith.select %42, %40, %43 : vector<2x8x8xi1>, vector<2x8x8xf32>
    %cst_19 = arith.constant dense<0xFF800000> : vector<2x8xf32>
    %45 = vector.multi_reduction <maximumf>, %44, %cst_19 [2] : vector<2x8x8xf32> to vector<2x8xf32>
    %46 = vector.shape_cast %45 : vector<2x8xf32> to vector<2x8x1xf32>
    %47 = vector.broadcast %46 : vector<2x8x1xf32> to vector<2x8x8xf32>
    %48 = arith.subf %44, %47 : vector<2x8x8xf32>
    %49 = math.exp %48 : vector<2x8x8xf32>
    %cst_20 = arith.constant dense<0.000000e+00> : vector<2x8xf32>
    %50 = vector.multi_reduction <add>, %49, %cst_20 [2] : vector<2x8x8xf32> to vector<2x8xf32>
    %51 = vector.shape_cast %50 : vector<2x8xf32> to vector<2x8x1xf32>
    %52 = vector.broadcast %51 : vector<2x8x1xf32> to vector<2x8x8xf32>
    %53 = arith.divf %49, %52 : vector<2x8x8xf32>
    %cst_21 = arith.constant 0.000000e+00 : f32
    %54 = vector.shape_cast %32 : vector<1x1x128xi1> to vector<1x1x128xi1>
    %55 = vector.broadcast %54 : vector<1x1x128xi1> to vector<2x8x128xi1>
    %56 = vector.broadcast %cst_21 : f32 to vector<2x8x128xf32>
    %57 = arith.select %55, %25, %56 : vector<2x8x128xi1>, vector<2x8x128xf32>
    %58 = arith.truncf %57 : vector<2x8x128xf32> to vector<2x8x128xbf16>
    %59 = arith.truncf %53 : vector<2x8x8xf32> to vector<2x8x8xbf16>
    "tpu.trace_start"() <{level = 10 : i32, message = "bqk,bkd->bqd"}> : () -> ()
    %cst_22 = arith.constant dense<0.000000e+00> : vector<2x8x128xf32>
    %60 = tpu.matmul %59, %58, %cst_22 {dimension_numbers = #tpu.dot_dimension_numbers<[2], [1], [1], [2], [0, 0, 0, 1, 1, 2], [0], [0]>} : vector<2x8x8xbf16>, vector<2x8x128xbf16>, vector<2x8x128xf32> -> vector<2x8x128xf32>
    "tpu.trace_stop"() : () -> ()
    %61 = arith.addf %27, %60 : vector<2x8x128xf32>
    %c16_i32_23 = arith.constant 16 : i32
    %62 = vector.broadcast %c16_i32_23 : i32 to vector<1x1x128xi32>
    %63 = arith.cmpi sge, %11, %62 : vector<1x1x128xi32>
    %c32_i32_24 = arith.constant 32 : i32
    %64 = vector.broadcast %c32_i32_24 : i32 to vector<1x1x128xi32>
    %65 = arith.cmpi slt, %11, %64 : vector<1x1x128xi32>
    %66 = arith.andi %63, %65 : vector<1x1x128xi1>
    %cst_25 = arith.constant 0.000000e+00 : f32
    %67 = vector.shape_cast %66 : vector<1x1x128xi1> to vector<1x1x128xi1>
    %68 = vector.broadcast %67 : vector<1x1x128xi1> to vector<2x8x128xi1>
    %69 = vector.broadcast %cst_25 : f32 to vector<2x8x128xf32>
    %70 = arith.select %68, %21, %69 : vector<2x8x128xi1>, vector<2x8x128xf32>
    %71 = arith.truncf %70 : vector<2x8x128xf32> to vector<2x8x128xbf16>
    "tpu.trace_start"() <{level = 10 : i32, message = "bqd,bkd->bqk"}> : () -> ()
    %cst_26 = arith.constant dense<0.000000e+00> : vector<2x8x8xf32>
    %72 = tpu.matmul %71, %26, %cst_26 {dimension_numbers = #tpu.dot_dimension_numbers<[2], [2], [1], [1], [0, 0, 0, 1, 1, 1], [0], [0]>} : vector<2x8x128xbf16>, vector<2x8x128xbf16>, vector<2x8x8xf32> -> vector<2x8x8xf32>
    "tpu.trace_stop"() : () -> ()
    %cst_27 = arith.constant 2.500000e-01 : f32
    %73 = vector.broadcast %cst_27 : f32 to vector<2x8x8xf32>
    %74 = arith.mulf %72, %73 : vector<2x8x8xf32>
    %cst_28 = arith.constant -1.000000e+09 : f32
    %75 = vector.shape_cast %7 : vector<2x1x8xi1> to vector<2x1x8xi1>
    %76 = vector.broadcast %75 : vector<2x1x8xi1> to vector<2x8x8xi1>
    %77 = vector.broadcast %cst_28 : f32 to vector<2x8x8xf32>
    %78 = arith.select %76, %74, %77 : vector<2x8x8xi1>, vector<2x8x8xf32>
    %cst_29 = arith.constant dense<0xFF800000> : vector<2x8xf32>
    %79 = vector.multi_reduction <maximumf>, %78, %cst_29 [2] : vector<2x8x8xf32> to vector<2x8xf32>
    %80 = vector.shape_cast %79 : vector<2x8xf32> to vector<2x8x1xf32>
    %81 = vector.broadcast %80 : vector<2x8x1xf32> to vector<2x8x8xf32>
    %82 = arith.subf %78, %81 : vector<2x8x8xf32>
    %83 = math.exp %82 : vector<2x8x8xf32>
    %cst_30 = arith.constant dense<0.000000e+00> : vector<2x8xf32>
    %84 = vector.multi_reduction <add>, %83, %cst_30 [2] : vector<2x8x8xf32> to vector<2x8xf32>
    %85 = vector.shape_cast %84 : vector<2x8xf32> to vector<2x8x1xf32>
    %86 = vector.broadcast %85 : vector<2x8x1xf32> to vector<2x8x8xf32>
    %87 = arith.divf %83, %86 : vector<2x8x8xf32>
    %cst_31 = arith.constant 0.000000e+00 : f32
    %88 = vector.shape_cast %66 : vector<1x1x128xi1> to vector<1x1x128xi1>
    %89 = vector.broadcast %88 : vector<1x1x128xi1> to vector<2x8x128xi1>
    %90 = vector.broadcast %cst_31 : f32 to vector<2x8x128xf32>
    %91 = arith.select %89, %25, %90 : vector<2x8x128xi1>, vector<2x8x128xf32>
    %92 = arith.truncf %91 : vector<2x8x128xf32> to vector<2x8x128xbf16>
    %93 = arith.truncf %87 : vector<2x8x8xf32> to vector<2x8x8xbf16>
    "tpu.trace_start"() <{level = 10 : i32, message = "bqk,bkd->bqd"}> : () -> ()
    %cst_32 = arith.constant dense<0.000000e+00> : vector<2x8x128xf32>
    %94 = tpu.matmul %93, %92, %cst_32 {dimension_numbers = #tpu.dot_dimension_numbers<[2], [1], [1], [2], [0, 0, 0, 1, 1, 2], [0], [0]>} : vector<2x8x8xbf16>, vector<2x8x128xbf16>, vector<2x8x128xf32> -> vector<2x8x128xf32>
    "tpu.trace_stop"() : () -> ()
    %95 = arith.addf %61, %94 : vector<2x8x128xf32>
    %96 = vector.shape_cast %95 : vector<2x8x128xf32> to vector<16x128xf32>
    %97 = arith.truncf %96 : vector<16x128xf32> to vector<16x128xbf16>
    %c0_33 = arith.constant 0 : index
    %c0_34 = arith.constant 0 : index
    %c0_35 = arith.constant 0 : index
    %98 = vector.load %arg6[%c0_33, %c0_34, %c0_35] : memref<1x128x128xbf16, #tpu.memory_space<vmem>>, vector<1x128x128xbf16>
    %99 = vector.shape_cast %98 : vector<1x128x128xbf16> to vector<128x128xbf16>
    %cst_36 = arith.constant dense<0.000000e+00> : vector<16x128xf32>
    %100 = tpu.matmul %97, %99, %cst_36 {dimension_numbers = #tpu.dot_dimension_numbers<[1], [0], [0], [1], [0, 0, 1, 1], [], []>} : vector<16x128xbf16>, vector<128x128xbf16>, vector<16x128xf32> -> vector<16x128xf32>
    %c0_37 = arith.constant 0 : index
    %c0_38 = arith.constant 0 : index
    %c0_39 = arith.constant 0 : index
    %101 = vector.load %arg7[%c0_37, %c0_38, %c0_39] : memref<1x1x128xf32, #tpu.memory_space<vmem>>, vector<1x1x128xf32>
    %102 = vector.shape_cast %101 : vector<1x1x128xf32> to vector<1x128xf32>
    %103 = vector.broadcast %102 : vector<1x128xf32> to vector<16x128xf32>
    %104 = arith.addf %100, %103 : vector<16x128xf32>
    %105 = arith.addf %4, %104 : vector<16x128xf32>
    %c0_40 = arith.constant 0 : index
    %c0_41 = arith.constant 0 : index
    %c0_42 = arith.constant 0 : index
    %106 = vector.load %arg8[%c0_40, %c0_41, %c0_42] : memref<1x1x128xf32, #tpu.memory_space<vmem>>, vector<1x1x128xf32>
    %107 = vector.shape_cast %106 : vector<1x1x128xf32> to vector<1x128xf32>
    %c0_43 = arith.constant 0 : index
    %c0_44 = arith.constant 0 : index
    %c0_45 = arith.constant 0 : index
    %108 = vector.load %arg9[%c0_43, %c0_44, %c0_45] : memref<1x1x128xf32, #tpu.memory_space<vmem>>, vector<1x1x128xf32>
    %109 = vector.shape_cast %108 : vector<1x1x128xf32> to vector<1x128xf32>
    %cst_46 = arith.constant dense<0.000000e+00> : vector<16xf32>
    %110 = vector.multi_reduction <add>, %105, %cst_46 [1] : vector<16x128xf32> to vector<16xf32>
    %111 = vector.shape_cast %110 : vector<16xf32> to vector<16x1xf32>
    %cst_47 = arith.constant 3.125000e-02 : f32
    %112 = vector.broadcast %cst_47 : f32 to vector<16x1xf32>
    %113 = arith.mulf %111, %112 : vector<16x1xf32>
    %114 = vector.broadcast %113 : vector<16x1xf32> to vector<16x128xf32>
    %115 = arith.subf %105, %114 : vector<16x128xf32>
    %cst_48 = arith.constant 0.000000e+00 : f32
    %116 = vector.shape_cast %10 : vector<1x128xi1> to vector<1x128xi1>
    %117 = vector.broadcast %116 : vector<1x128xi1> to vector<16x128xi1>
    %118 = vector.broadcast %cst_48 : f32 to vector<16x128xf32>
    %119 = arith.select %117, %115, %118 : vector<16x128xi1>, vector<16x128xf32>
    %120 = arith.mulf %119, %119 : vector<16x128xf32>
    %cst_49 = arith.constant dense<0.000000e+00> : vector<16xf32>
    %121 = vector.multi_reduction <add>, %120, %cst_49 [1] : vector<16x128xf32> to vector<16xf32>
    %122 = vector.shape_cast %121 : vector<16xf32> to vector<16x1xf32>
    %cst_50 = arith.constant 0.0322580636 : f32
    %123 = vector.broadcast %cst_50 : f32 to vector<16x1xf32>
    %124 = arith.mulf %122, %123 : vector<16x1xf32>
    %125 = math.sqrt %124 : vector<16x1xf32>
    %cst_51 = arith.constant 9.99999997E-7 : f32
    %126 = vector.broadcast %cst_51 : f32 to vector<16x1xf32>
    %127 = arith.addf %125, %126 : vector<16x1xf32>
    %128 = vector.broadcast %127 : vector<16x1xf32> to vector<16x128xf32>
    %129 = arith.divf %119, %128 : vector<16x128xf32>
    %130 = vector.broadcast %107 : vector<1x128xf32> to vector<16x128xf32>
    %131 = arith.mulf %130, %129 : vector<16x128xf32>
    %132 = vector.broadcast %109 : vector<1x128xf32> to vector<16x128xf32>
    %133 = arith.addf %131, %132 : vector<16x128xf32>
    %134 = arith.truncf %133 : vector<16x128xf32> to vector<16x128xbf16>
    %c0_52 = arith.constant 0 : index
    %c0_53 = arith.constant 0 : index
    %c0_54 = arith.constant 0 : index
    %135 = vector.load %arg10[%c0_52, %c0_53, %c0_54] : memref<1x128x128xbf16, #tpu.memory_space<vmem>>, vector<1x128x128xbf16>
    %136 = vector.shape_cast %135 : vector<1x128x128xbf16> to vector<128x128xbf16>
    %cst_55 = arith.constant dense<0.000000e+00> : vector<16x128xf32>
    %137 = tpu.matmul %134, %136, %cst_55 {dimension_numbers = #tpu.dot_dimension_numbers<[1], [0], [0], [1], [0, 0, 1, 1], [], []>} : vector<16x128xbf16>, vector<128x128xbf16>, vector<16x128xf32> -> vector<16x128xf32>
    %c0_56 = arith.constant 0 : index
    %c0_57 = arith.constant 0 : index
    %c0_58 = arith.constant 0 : index
    %138 = vector.load %arg11[%c0_56, %c0_57, %c0_58] : memref<1x1x128xf32, #tpu.memory_space<vmem>>, vector<1x1x128xf32>
    %139 = vector.shape_cast %138 : vector<1x1x128xf32> to vector<1x128xf32>
    %140 = vector.broadcast %139 : vector<1x128xf32> to vector<16x128xf32>
    %141 = arith.addf %137, %140 : vector<16x128xf32>
    %cst_59 = arith.constant 5.000000e-01 : f32
    %142 = vector.broadcast %cst_59 : f32 to vector<16x128xf32>
    %143 = arith.mulf %142, %141 : vector<16x128xf32>
    %cst_60 = arith.constant 4.471500e-02 : f32
    %144 = vector.broadcast %cst_60 : f32 to vector<16x128xf32>
    %145 = arith.mulf %144, %141 : vector<16x128xf32>
    %146 = arith.mulf %145, %141 : vector<16x128xf32>
    %147 = arith.mulf %146, %141 : vector<16x128xf32>
    %148 = arith.addf %141, %147 : vector<16x128xf32>
    %cst_61 = arith.constant 0.797884583 : f32
    %149 = vector.broadcast %cst_61 : f32 to vector<16x128xf32>
    %150 = arith.mulf %149, %148 : vector<16x128xf32>
    %151 = math.tanh %150 : vector<16x128xf32>
    %cst_62 = arith.constant 1.000000e+00 : f32
    %152 = vector.broadcast %cst_62 : f32 to vector<16x128xf32>
    %153 = arith.addf %152, %151 : vector<16x128xf32>
    %154 = arith.mulf %143, %153 : vector<16x128xf32>
    %155 = arith.truncf %154 : vector<16x128xf32> to vector<16x128xbf16>
    %c0_63 = arith.constant 0 : index
    %c0_64 = arith.constant 0 : index
    %c0_65 = arith.constant 0 : index
    %156 = vector.load %arg12[%c0_63, %c0_64, %c0_65] : memref<1x128x128xbf16, #tpu.memory_space<vmem>>, vector<1x128x128xbf16>
    %157 = vector.shape_cast %156 : vector<1x128x128xbf16> to vector<128x128xbf16>
    %cst_66 = arith.constant dense<0.000000e+00> : vector<16x128xf32>
    %158 = tpu.matmul %155, %157, %cst_66 {dimension_numbers = #tpu.dot_dimension_numbers<[1], [0], [0], [1], [0, 0, 1, 1], [], []>} : vector<16x128xbf16>, vector<128x128xbf16>, vector<16x128xf32> -> vector<16x128xf32>
    %c0_67 = arith.constant 0 : index
    %c0_68 = arith.constant 0 : index
    %c0_69 = arith.constant 0 : index
    %159 = vector.load %arg13[%c0_67, %c0_68, %c0_69] : memref<1x1x128xf32, #tpu.memory_space<vmem>>, vector<1x1x128xf32>
    %160 = vector.shape_cast %159 : vector<1x1x128xf32> to vector<1x128xf32>
    %161 = vector.broadcast %160 : vector<1x128xf32> to vector<16x128xf32>
    %162 = arith.addf %158, %161 : vector<16x128xf32>
    %163 = arith.addf %133, %162 : vector<16x128xf32>
    %c0_70 = arith.constant 0 : index
    %c0_71 = arith.constant 0 : index
    %c0_72 = arith.constant 0 : index
    %164 = vector.load %arg14[%c0_70, %c0_71, %c0_72] : memref<1x1x128xf32, #tpu.memory_space<vmem>>, vector<1x1x128xf32>
    %165 = vector.shape_cast %164 : vector<1x1x128xf32> to vector<1x128xf32>
    %c0_73 = arith.constant 0 : index
    %c0_74 = arith.constant 0 : index
    %c0_75 = arith.constant 0 : index
    %166 = vector.load %arg15[%c0_73, %c0_74, %c0_75] : memref<1x1x128xf32, #tpu.memory_space<vmem>>, vector<1x1x128xf32>
    %167 = vector.shape_cast %166 : vector<1x1x128xf32> to vector<1x128xf32>
    %cst_76 = arith.constant dense<0.000000e+00> : vector<16xf32>
    %168 = vector.multi_reduction <add>, %163, %cst_76 [1] : vector<16x128xf32> to vector<16xf32>
    %169 = vector.shape_cast %168 : vector<16xf32> to vector<16x1xf32>
    %cst_77 = arith.constant 3.125000e-02 : f32
    %170 = vector.broadcast %cst_77 : f32 to vector<16x1xf32>
    %171 = arith.mulf %169, %170 : vector<16x1xf32>
    %172 = vector.broadcast %171 : vector<16x1xf32> to vector<16x128xf32>
    %173 = arith.subf %163, %172 : vector<16x128xf32>
    %cst_78 = arith.constant 0.000000e+00 : f32
    %174 = vector.shape_cast %10 : vector<1x128xi1> to vector<1x128xi1>
    %175 = vector.broadcast %174 : vector<1x128xi1> to vector<16x128xi1>
    %176 = vector.broadcast %cst_78 : f32 to vector<16x128xf32>
    %177 = arith.select %175, %173, %176 : vector<16x128xi1>, vector<16x128xf32>
    %178 = arith.mulf %177, %177 : vector<16x128xf32>
    %cst_79 = arith.constant dense<0.000000e+00> : vector<16xf32>
    %179 = vector.multi_reduction <add>, %178, %cst_79 [1] : vector<16x128xf32> to vector<16xf32>
    %180 = vector.shape_cast %179 : vector<16xf32> to vector<16x1xf32>
    %cst_80 = arith.constant 0.0322580636 : f32
    %181 = vector.broadcast %cst_80 : f32 to vector<16x1xf32>
    %182 = arith.mulf %180, %181 : vector<16x1xf32>
    %183 = math.sqrt %182 : vector<16x1xf32>
    %cst_81 = arith.constant 9.99999997E-7 : f32
    %184 = vector.broadcast %cst_81 : f32 to vector<16x1xf32>
    %185 = arith.addf %183, %184 : vector<16x1xf32>
    %186 = vector.broadcast %185 : vector<16x1xf32> to vector<16x128xf32>
    %187 = arith.divf %177, %186 : vector<16x128xf32>
    %188 = vector.broadcast %165 : vector<1x128xf32> to vector<16x128xf32>
    %189 = arith.mulf %188, %187 : vector<16x128xf32>
    %190 = vector.broadcast %167 : vector<1x128xf32> to vector<16x128xf32>
    %191 = arith.addf %189, %190 : vector<16x128xf32>
    %192 = vector.shape_cast %191 : vector<16x128xf32> to vector<2x8x128xf32>
    %c0_82 = arith.constant 0 : index
    %c0_83 = arith.constant 0 : index
    %c0_84 = arith.constant 0 : index
    %193 = vector.load %arg17[%c0_82, %c0_83, %c0_84] : memref<2x8x128xf32, #tpu.memory_space<vmem>>, vector<2x8x128xf32>
    tpu.vector_store %arg17[%c0_82, %c0_83, %c0_84], %192 {strides = array<i32>} : memref<2x8x128xf32, #tpu.memory_space<vmem>>, vector<2x8x128xf32>,
    %c1_i32 = arith.constant 1 : i32
    %194 = arith.cmpi eq, %arg1, %c1_i32 : i32
    %195 = arith.extui %194 : i1 to i32
    %c0_i32_85 = arith.constant 0 : i32
    %196 = arith.cmpi ne, %195, %c0_i32_85 : i32
    scf.if %196 {
      %197 = vector.shape_cast %191 : vector<16x128xf32> to vector<2x8x128xf32>
      %198 = arith.truncf %197 : vector<2x8x128xf32> to vector<2x8x128xbf16>
      %c0_86 = arith.constant 0 : index
      %c0_87 = arith.constant 0 : index
      %c0_88 = arith.constant 0 : index
      %199 = vector.load %arg16[%c0_86, %c0_87, %c0_88] : memref<2x8x128xbf16, #tpu.memory_space<vmem>>, vector<2x8x128xbf16>
      tpu.vector_store %arg16[%c0_86, %c0_87, %c0_88], %198 {strides = array<i32>} : memref<2x8x128xbf16, #tpu.memory_space<vmem>>, vector<2x8x128xbf16>,
    } else {
    }
    return
  }
  func.func @transform_0(%arg0: i32, %arg1: i32) -> (i32, i32, i32) {
    %c0_i32 = arith.constant 0 : i32
    %c0_i32_0 = arith.constant 0 : i32
    %c0_i32_1 = arith.constant 0 : i32
    return %arg0, %c0_i32, %c0_i32_0 : i32, i32, i32
  }
  func.func @transform_1(%arg0: i32, %arg1: i32) -> (i32, i32, i32) {
    %c0_i32 = arith.constant 0 : i32
    %c0_i32_0 = arith.constant 0 : i32
    %c0_i32_1 = arith.constant 0 : i32
    return %arg0, %c0_i32, %c0_i32_0 : i32, i32, i32
  }
  func.func @transform_2(%arg0: i32, %arg1: i32) -> (i32, i32, i32) {
    %c0_i32 = arith.constant 0 : i32
    %c0_i32_0 = arith.constant 0 : i32
    %c0_i32_1 = arith.constant 0 : i32
    return %arg1, %c0_i32, %c0_i32_0 : i32, i32, i32
  }
  func.func @transform_3(%arg0: i32, %arg1: i32) -> (i32, i32, i32) {
    %c0_i32 = arith.constant 0 : i32
    %c0_i32_0 = arith.constant 0 : i32
    %c0_i32_1 = arith.constant 0 : i32
    return %arg1, %c0_i32, %c0_i32_0 : i32, i32, i32
  }
  func.func @transform_4(%arg0: i32, %arg1: i32) -> (i32, i32, i32) {
    %c0_i32 = arith.constant 0 : i32
    %c0_i32_0 = arith.constant 0 : i32
    %c0_i32_1 = arith.constant 0 : i32
    return %arg1, %c0_i32, %c0_i32_0 : i32, i32, i32
  }
  func.func @transform_5(%arg0: i32, %arg1: i32) -> (i32, i32, i32) {
    %c0_i32 = arith.constant 0 : i32
    %c0_i32_0 = arith.constant 0 : i32
    %c0_i32_1 = arith.constant 0 : i32
    return %arg1, %c0_i32, %c0_i32_0 : i32, i32, i32
  }
  func.func @transform_6(%arg0: i32, %arg1: i32) -> (i32, i32, i32) {
    %c0_i32 = arith.constant 0 : i32
    %c0_i32_0 = arith.constant 0 : i32
    %c0_i32_1 = arith.constant 0 : i32
    return %arg1, %c0_i32, %c0_i32_0 : i32, i32, i32
  }
  func.func @transform_7(%arg0: i32, %arg1: i32) -> (i32, i32, i32) {
    %c0_i32 = arith.constant 0 : i32
    %c0_i32_0 = arith.constant 0 : i32
    %c0_i32_1 = arith.constant 0 : i32
    return %arg1, %c0_i32, %c0_i32_0 : i32, i32, i32
  }
  func.func @transform_8(%arg0: i32, %arg1: i32) -> (i32, i32, i32) {
    %c0_i32 = arith.constant 0 : i32
    %c0_i32_0 = arith.constant 0 : i32
    %c0_i32_1 = arith.constant 0 : i32
    return %arg1, %c0_i32, %c0_i32_0 : i32, i32, i32
  }
  func.func @transform_9(%arg0: i32, %arg1: i32) -> (i32, i32, i32) {
    %c0_i32 = arith.constant 0 : i32
    %c0_i32_0 = arith.constant 0 : i32
    %c0_i32_1 = arith.constant 0 : i32
    return %arg1, %c0_i32, %c0_i32_0 : i32, i32, i32
  }
  func.func @transform_10(%arg0: i32, %arg1: i32) -> (i32, i32, i32) {
    %c0_i32 = arith.constant 0 : i32
    %c0_i32_0 = arith.constant 0 : i32
    %c0_i32_1 = arith.constant 0 : i32
    return %arg1, %c0_i32, %c0_i32_0 : i32, i32, i32
  }
  func.func @transform_11(%arg0: i32, %arg1: i32) -> (i32, i32, i32) {
    %c0_i32 = arith.constant 0 : i32
    %c0_i32_0 = arith.constant 0 : i32
    %c0_i32_1 = arith.constant 0 : i32
    return %arg1, %c0_i32, %c0_i32_0 : i32, i32, i32
  }
  func.func @transform_12(%arg0: i32, %arg1: i32) -> (i32, i32, i32) {
    %c0_i32 = arith.constant 0 : i32
    %c0_i32_0 = arith.constant 0 : i32
    %c0_i32_1 = arith.constant 0 : i32
    return %arg1, %c0_i32, %c0_i32_0 : i32, i32, i32
  }
  func.func @transform_13(%arg0: i32, %arg1: i32) -> (i32, i32, i32) {
    %c0_i32 = arith.constant 0 : i32
    %c0_i32_0 = arith.constant 0 : i32
    %c0_i32_1 = arith.constant 0 : i32
    return %arg1, %c0_i32, %c0_i32_0 : i32, i32, i32
  }
  func.func @transform_14(%arg0: i32, %arg1: i32) -> (i32, i32, i32) {
    %c0_i32 = arith.constant 0 : i32
    %c0_i32_0 = arith.constant 0 : i32
    %c0_i32_1 = arith.constant 0 : i32
    return %arg0, %c0_i32, %c0_i32_0 : i32, i32, i32
  }
}

</mosaic_0001>

<llo_original>
// kernel: tpu_custom_call.1
$region0: #{tpu_custom_call.1}
  #allocation0 [shape = 'u32[]', space=smem, size = 0x4, offset = 0x4, fixed_abs, tag = 'smem constant byte address 0x4 - core index']
  #allocation1 [shape = 'u32[144,128]{1,0:T(1,128)}', space=vmem, size = 0x12000, scoped, tag = 'internal scratch']
  #allocation2 [shape = 'f32[2,8,128]{2,1,0:T(8,128)}', space=vmem, size = 0x2000, scoped, tag = 'scratch operand']
  %s0 = inlined_call_operand.hbm [shape: f32[2,8,128], index: 0, kind: input, shape index: {}]
  %s1 = inlined_call_operand.hbm [shape: f32[2,1,8], index: 1, kind: input, shape index: {}]
  %s2 = inlined_call_operand.hbm [shape: bf16[2,128,384], index: 2, kind: input, shape index: {}]
  %s3 = inlined_call_operand.hbm [shape: f32[2,1,384], index: 3, kind: input, shape index: {}]
  %s4 = inlined_call_operand.hbm [shape: bf16[2,128,128], index: 4, kind: input, shape index: {}]
  %s5 = inlined_call_operand.vmem [shape: f32[2,1,128], index: 5, kind: input, shape index: {}]
  %s6 = inlined_call_operand.vmem [shape: f32[2,1,128], index: 6, kind: input, shape index: {}]
  %s7 = inlined_call_operand.vmem [shape: f32[2,1,128], index: 7, kind: input, shape index: {}]
  %s8 = inlined_call_operand.hbm [shape: bf16[2,128,128], index: 8, kind: input, shape index: {}]
  %s9 = inlined_call_operand.vmem [shape: f32[2,1,128], index: 9, kind: input, shape index: {}]
  %s10 = inlined_call_operand.hbm [shape: bf16[2,128,128], index: 10, kind: input, shape index: {}]
  %s11 = inlined_call_operand.vmem [shape: f32[2,1,128], index: 11, kind: input, shape index: {}]
  %s12 = inlined_call_operand.vmem [shape: f32[2,1,128], index: 12, kind: input, shape index: {}]
  %s13 = inlined_call_operand.vmem [shape: f32[2,1,128], index: 13, kind: input, shape index: {}]
  %s14 = inlined_call_operand.hbm [shape: bf16[2,8,128], index: 14, kind: output, shape index: {}]
  %s15 = sld [smem:[#allocation0]]
  $region125: #{tpu_custom_call.1} parent=0
    _
  %s17 = ssub.s32 1, %s15
  %s18 = scalar_select 0, %s17, %s15
  $region1: #{tpu_custom_call.1} parent=0
    #allocation3 [shape = 'u8[8192]{0}', space=vmem, size = 0x2000, scoped, tag = 'input window, operand 0, single buffered']
    #allocation4 [shape = 's32[2]{0}', space=sflag, size = 0x8, scoped, tag = 'scoped memory for tpu_custom_call.1']
    #allocation5 [shape = 's32[2]{0}', space=sflag, size = 0x8, scoped, tag = 'scoped memory for tpu_custom_call.1']
    #allocation6 [shape = 'u8[1024]{0}', space=vmem, size = 0x400, scoped, tag = 'input window, operand 1, single buffered']
    #allocation7 [shape = 's32[1]{0}', space=sflag, size = 0x4, scoped, tag = 'scoped memory for tpu_custom_call.1']
    #allocation8 [shape = 'u8[196608]{0}', space=vmem, size = 0x30000, scoped, tag = 'input window, operand 2']
    #allocation9 [shape = 'u8[3072]{0}', space=vmem, size = 0xc00, scoped, tag = 'input window, operand 3']
    #allocation10 [shape = 'u8[65536]{0}', space=vmem, size = 0x10000, scoped, tag = 'input window, operand 4']
    #allocation11 [shape = 'u8[65536]{0}', space=vmem, size = 0x10000, scoped, tag = 'input window, operand 8']
    #allocation12 [shape = 'u8[65536]{0}', space=vmem, size = 0x10000, scoped, tag = 'input window, operand 10']
    #allocation13 [shape = 'u8[4096]{0}', space=vmem, size = 0x1000, scoped, tag = 'output window, operand 0, single buffered']
    %19 = vsyncpa [#allocation4], 0
    %20 = vsyncpa [#allocation7], 0
    %21 = vsyncpa [#allocation5], 0
    loop: start=0, step=1, limit=4
    $region2: #{tpu_custom_call.1} parent=1 // loop_pre_header
      _
    $region3: #{tpu_custom_call.1} parent=1 // loop_header
      %s23 = sphi 0, %s27
      %p24 = scmp.ge.s32.totalorder %s23, 4
      %s30 = sphi 0, %s42
      %s31 = sphi 0, %s38
      %s32 = sphi 0, %s30
      %s33 = sphi 0, %s31
      %s34 = sphi 0, %s32
      %s35 = sphi 0, %s33
      %s45 = sphi 0, %s47
      %s48 = sphi 0, %s45
      %s49 = sphi 0, %s48
      %s65 = sphi 0, %s49
      %s71 = sphi 0, %s73
      %s74 = sphi 0, %s71
      %s75 = sphi 0, %s74
      %s91 = sphi 0, %s75
      %s97 = sphi 0, %s99
      %s100 = sphi 0, %s97
      %s101 = sphi 0, %s100
      %s117 = sphi 0, %s101
      %s123 = sphi 0, %s125
      %s126 = sphi 0, %s123
      %s127 = sphi 0, %s126
      %s143 = sphi 0, %s127
      %s149 = sphi 0, %s151
      %s152 = sphi 0, %s149
      %s153 = sphi 0, %s152
      %s169 = sphi 0, %s153
      %s175 = sphi 0, %s177
      %s178 = sphi 0, %s175
      %s179 = sphi 0, %s178
      %s195 = sphi 0, %s179
      %s201 = sphi 0, %s203
      %s204 = sphi 0, %s201
      %s205 = sphi 0, %s204
      %s221 = sphi 0, %s205
      %s227 = sphi 0, %s229
      %s230 = sphi 0, %s227
      %s231 = sphi 0, %s230
      %s247 = sphi 0, %s231
      %s253 = sphi 0, %s255
      %s256 = sphi 0, %s253
      %s257 = sphi 0, %s256
      %s273 = sphi 0, %s257
      %s279 = sphi 0, %s281
      %s282 = sphi 0, %s279
      %s283 = sphi 0, %s282
      %s299 = sphi 0, %s283
      %s305 = sphi 0, %s307
      %s308 = sphi 0, %s305
      %s309 = sphi 0, %s308
      %s325 = sphi 0, %s309
      %s331 = sphi 0, %s333
      %s334 = sphi 0, %s331
      %s335 = sphi 0, %s334
      %s351 = sphi 0, %s335
      %s357 = sphi 0, %s359
      %s360 = sphi 0, %s357
      %s361 = sphi 0, %s360
      %s377 = sphi 0, %s361
      %s383 = sphi 0, %s385
      %s386 = sphi 0, %s383
      %s387 = sphi 0, %s386
      %s403 = sphi 0, %s387
      %s409 = sphi 0, %s411
      %s412 = sphi 0, %s409
      %s413 = sphi 0, %s412
      %s429 = sphi 0, %s413
    $region4: #{tpu_custom_call.1} parent=1 // loop_header_branch
      %26 = sbr.rel (%p24) target = $region8
    $region5: #{tpu_custom_call.1} parent=1 // loop_body
      %s28 = ssub.s32 %s23, 1
      %s29 = ssub.s32 %s23, 2
      %s36 = sadd.s32 1, %s31
      %p37 = scmp.ge.s32.totalorder %s36, 2
      %s38 = scalar_select %p37, 0, %s36
      %s39 = sadd.s32 1, %s30
      %s40 = scalar_select %p37, %s39, %s30
      %p41 = scmp.ge.s32.totalorder %s40, 1
      %s42 = scalar_select %p41, 0, %s40
      %s43 = ssub.s32 %s30, %s42
      %p44 = scmp.eq.s32.totalorder %s43, 0
      %s46 = sadd.s32 %s45, 1
      %s47 = scalar_select %p44, %s45, %s46
      %p50 = pneg %p44
      %p51 = scmp.eq.s32.totalorder %s23, 1
      %p52 = por %p50, %p51
      %p53 = scmp.ne.s32.totalorder %s45, %s48
      %p54 = scmp.eq.s32.totalorder %s23, 0
      %p55 = por %p53, %p54
      %p56 = scmp.ne.s32.totalorder %s45, %s48
      %p57 = scmp.eq.s32.totalorder %s28, 1
      %p58 = por %p56, %p57
      %p59 = scmp.ne.s32.totalorder %s48, %s49
      %p60 = scmp.eq.s32.totalorder %s28, 0
      %p61 = por %p59, %p60
      %p62 = scmp.ne.s32.totalorder %s48, %s49
      %p63 = scmp.eq.s32.totalorder %s29, 1
      %p64 = por %p62, %p63
      %p66 = scmp.ne.s32.totalorder %s49, %s65
      %p67 = scmp.eq.s32.totalorder %s29, 0
      %p68 = por %p66, %p67
      %s69 = ssub.s32 %s30, %s42
      %p70 = scmp.eq.s32.totalorder %s69, 0
      %s72 = sadd.s32 %s71, 1
      %s73 = scalar_select %p70, %s71, %s72
      %p76 = pneg %p70
      %p77 = scmp.eq.s32.totalorder %s23, 1
      %p78 = por %p76, %p77
      %p79 = scmp.ne.s32.totalorder %s71, %s74
      %p80 = scmp.eq.s32.totalorder %s23, 0
      %p81 = por %p79, %p80
      %p82 = scmp.ne.s32.totalorder %s71, %s74
      %p83 = scmp.eq.s32.totalorder %s28, 1
      %p84 = por %p82, %p83
      %p85 = scmp.ne.s32.totalorder %s74, %s75
      %p86 = scmp.eq.s32.totalorder %s28, 0
      %p87 = por %p85, %p86
      %p88 = scmp.ne.s32.totalorder %s74, %s75
      %p89 = scmp.eq.s32.totalorder %s29, 1
      %p90 = por %p88, %p89
      %p92 = scmp.ne.s32.totalorder %s75, %s91
      %p93 = scmp.eq.s32.totalorder %s29, 0
      %p94 = por %p92, %p93
      %s95 = ssub.s32 %s31, %s38
      %p96 = scmp.eq.s32.totalorder %s95, 0
      %s98 = sadd.s32 %s97, 1
      %s99 = scalar_select %p96, %s97, %s98
      %p102 = pneg %p96
      %p103 = scmp.eq.s32.totalorder %s23, 1
      %p104 = por %p102, %p103
      %p105 = scmp.ne.s32.totalorder %s97, %s100
      %p106 = scmp.eq.s32.totalorder %s23, 0
      %p107 = por %p105, %p106
      %p108 = scmp.ne.s32.totalorder %s97, %s100
      %p109 = scmp.eq.s32.totalorder %s28, 1
      %p110 = por %p108, %p109
      %p111 = scmp.ne.s32.totalorder %s100, %s101
      %p112 = scmp.eq.s32.totalorder %s28, 0
      %p113 = por %p111, %p112
      %p114 = scmp.ne.s32.totalorder %s100, %s101
      %p115 = scmp.eq.s32.totalorder %s29, 1
      %p116 = por %p114, %p115
      %p118 = scmp.ne.s32.totalorder %s101, %s117
      %p119 = scmp.eq.s32.totalorder %s29, 0
      %p120 = por %p118, %p119
      %s121 = ssub.s32 %s31, %s38
      %p122 = scmp.eq.s32.totalorder %s121, 0
      %s124 = sadd.s32 %s123, 1
      %s125 = scalar_select %p122, %s123, %s124
      %p128 = pneg %p122
      %p129 = scmp.eq.s32.totalorder %s23, 1
      %p130 = por %p128, %p129
      %p131 = scmp.ne.s32.totalorder %s123, %s126
      %p132 = scmp.eq.s32.totalorder %s23, 0
      %p133 = por %p131, %p132
      %p134 = scmp.ne.s32.totalorder %s123, %s126
      %p135 = scmp.eq.s32.totalorder %s28, 1
      %p136 = por %p134, %p135
      %p137 = scmp.ne.s32.totalorder %s126, %s127
      %p138 = scmp.eq.s32.totalorder %s28, 0
      %p139 = por %p137, %p138
      %p140 = scmp.ne.s32.totalorder %s126, %s127
      %p141 = scmp.eq.s32.totalorder %s29, 1
      %p142 = por %p140, %p141
      %p144 = scmp.ne.s32.totalorder %s127, %s143
      %p145 = scmp.eq.s32.totalorder %s29, 0
      %p146 = por %p144, %p145
      %s147 = ssub.s32 %s31, %s38
      %p148 = scmp.eq.s32.totalorder %s147, 0
      %s150 = sadd.s32 %s149, 1
      %s151 = scalar_select %p148, %s149, %s150
      %p154 = pneg %p148
      %p155 = scmp.eq.s32.totalorder %s23, 1
      %p156 = por %p154, %p155
      %p157 = scmp.ne.s32.totalorder %s149, %s152
      %p158 = scmp.eq.s32.totalorder %s23, 0
      %p159 = por %p157, %p158
      %p160 = scmp.ne.s32.totalorder %s149, %s152
      %p161 = scmp.eq.s32.totalorder %s28, 1
      %p162 = por %p160, %p161
      %p163 = scmp.ne.s32.totalorder %s152, %s153
      %p164 = scmp.eq.s32.totalorder %s28, 0
      %p165 = por %p163, %p164
      %p166 = scmp.ne.s32.totalorder %s152, %s153
      %p167 = scmp.eq.s32.totalorder %s29, 1
      %p168 = por %p166, %p167
      %p170 = scmp.ne.s32.totalorder %s153, %s169
      %p171 = scmp.eq.s32.totalorder %s29, 0
      %p172 = por %p170, %p171
      %s173 = ssub.s32 %s31, %s38
      %p174 = scmp.eq.s32.totalorder %s173, 0
      %s176 = sadd.s32 %s175, 1
      %s177 = scalar_select %p174, %s175, %s176
      %p180 = pneg %p174
      %p181 = scmp.eq.s32.totalorder %s23, 1
      %p182 = por %p180, %p181
      %p183 = scmp.ne.s32.totalorder %s175, %s178
      %p184 = scmp.eq.s32.totalorder %s23, 0
      %p185 = por %p183, %p184
      %p186 = scmp.ne.s32.totalorder %s175, %s178
      %p187 = scmp.eq.s32.totalorder %s28, 1
      %p188 = por %p186, %p187
      %p189 = scmp.ne.s32.totalorder %s178, %s179
      %p190 = scmp.eq.s32.totalorder %s28, 0
      %p191 = por %p189, %p190
      %p192 = scmp.ne.s32.totalorder %s178, %s179
      %p193 = scmp.eq.s32.totalorder %s29, 1
      %p194 = por %p192, %p193
      %p196 = scmp.ne.s32.totalorder %s179, %s195
      %p197 = scmp.eq.s32.totalorder %s29, 0
      %p198 = por %p196, %p197
      %s199 = ssub.s32 %s31, %s38
      %p200 = scmp.eq.s32.totalorder %s199, 0
      %s202 = sadd.s32 %s201, 1
      %s203 = scalar_select %p200, %s201, %s202
      %p206 = pneg %p200
      %p207 = scmp.eq.s32.totalorder %s23, 1
      %p208 = por %p206, %p207
      %p209 = scmp.ne.s32.totalorder %s201, %s204
      %p210 = scmp.eq.s32.totalorder %s23, 0
      %p211 = por %p209, %p210
      %p212 = scmp.ne.s32.totalorder %s201, %s204
      %p213 = scmp.eq.s32.totalorder %s28, 1
      %p214 = por %p212, %p213
      %p215 = scmp.ne.s32.totalorder %s204, %s205
      %p216 = scmp.eq.s32.totalorder %s28, 0
      %p217 = por %p215, %p216
      %p218 = scmp.ne.s32.totalorder %s204, %s205
      %p219 = scmp.eq.s32.totalorder %s29, 1
      %p220 = por %p218, %p219
      %p222 = scmp.ne.s32.totalorder %s205, %s221
      %p223 = scmp.eq.s32.totalorder %s29, 0
      %p224 = por %p222, %p223
      %s225 = ssub.s32 %s31, %s38
      %p226 = scmp.eq.s32.totalorder %s225, 0
      %s228 = sadd.s32 %s227, 1
      %s229 = scalar_select %p226, %s227, %s228
      %p232 = pneg %p226
      %p233 = scmp.eq.s32.totalorder %s23, 1
      %p234 = por %p232, %p233
      %p235 = scmp.ne.s32.totalorder %s227, %s230
      %p236 = scmp.eq.s32.totalorder %s23, 0
      %p237 = por %p235, %p236
      %p238 = scmp.ne.s32.totalorder %s227, %s230
      %p239 = scmp.eq.s32.totalorder %s28, 1
      %p240 = por %p238, %p239
      %p241 = scmp.ne.s32.totalorder %s230, %s231
      %p242 = scmp.eq.s32.totalorder %s28, 0
      %p243 = por %p241, %p242
      %p244 = scmp.ne.s32.totalorder %s230, %s231
      %p245 = scmp.eq.s32.totalorder %s29, 1
      %p246 = por %p244, %p245
      %p248 = scmp.ne.s32.totalorder %s231, %s247
      %p249 = scmp.eq.s32.totalorder %s29, 0
      %p250 = por %p248, %p249
      %s251 = ssub.s32 %s31, %s38
      %p252 = scmp.eq.s32.totalorder %s251, 0
      %s254 = sadd.s32 %s253, 1
      %s255 = scalar_select %p252, %s253, %s254
      %p258 = pneg %p252
      %p259 = scmp.eq.s32.totalorder %s23, 1
      %p260 = por %p258, %p259
      %p261 = scmp.ne.s32.totalorder %s253, %s256
      %p262 = scmp.eq.s32.totalorder %s23, 0
      %p263 = por %p261, %p262
      %p264 = scmp.ne.s32.totalorder %s253, %s256
      %p265 = scmp.eq.s32.totalorder %s28, 1
      %p266 = por %p264, %p265
      %p267 = scmp.ne.s32.totalorder %s256, %s257
      %p268 = scmp.eq.s32.totalorder %s28, 0
      %p269 = por %p267, %p268
      %p270 = scmp.ne.s32.totalorder %s256, %s257
      %p271 = scmp.eq.s32.totalorder %s29, 1
      %p272 = por %p270, %p271
      %p274 = scmp.ne.s32.totalorder %s257, %s273
      %p275 = scmp.eq.s32.totalorder %s29, 0
      %p276 = por %p274, %p275
      %s277 = ssub.s32 %s31, %s38
      %p278 = scmp.eq.s32.totalorder %s277, 0
      %s280 = sadd.s32 %s279, 1
      %s281 = scalar_select %p278, %s279, %s280
      %p284 = pneg %p278
      %p285 = scmp.eq.s32.totalorder %s23, 1
      %p286 = por %p284, %p285
      %p287 = scmp.ne.s32.totalorder %s279, %s282
      %p288 = scmp.eq.s32.totalorder %s23, 0
      %p289 = por %p287, %p288
      %p290 = scmp.ne.s32.totalorder %s279, %s282
      %p291 = scmp.eq.s32.totalorder %s28, 1
      %p292 = por %p290, %p291
      %p293 = scmp.ne.s32.totalorder %s282, %s283
      %p294 = scmp.eq.s32.totalorder %s28, 0
      %p295 = por %p293, %p294
      %p296 = scmp.ne.s32.totalorder %s282, %s283
      %p297 = scmp.eq.s32.totalorder %s29, 1
      %p298 = por %p296, %p297
      %p300 = scmp.ne.s32.totalorder %s283, %s299
      %p301 = scmp.eq.s32.totalorder %s29, 0
      %p302 = por %p300, %p301
      %s303 = ssub.s32 %s31, %s38
      %p304 = scmp.eq.s32.totalorder %s303, 0
      %s306 = sadd.s32 %s305, 1
      %s307 = scalar_select %p304, %s305, %s306
      %p310 = pneg %p304
      %p311 = scmp.eq.s32.totalorder %s23, 1
      %p312 = por %p310, %p311
      %p313 = scmp.ne.s32.totalorder %s305, %s308
      %p314 = scmp.eq.s32.totalorder %s23, 0
      %p315 = por %p313, %p314
      %p316 = scmp.ne.s32.totalorder %s305, %s308
      %p317 = scmp.eq.s32.totalorder %s28, 1
      %p318 = por %p316, %p317
      %p319 = scmp.ne.s32.totalorder %s308, %s309
      %p320 = scmp.eq.s32.totalorder %s28, 0
      %p321 = por %p319, %p320
      %p322 = scmp.ne.s32.totalorder %s308, %s309
      %p323 = scmp.eq.s32.totalorder %s29, 1
      %p324 = por %p322, %p323
      %p326 = scmp.ne.s32.totalorder %s309, %s325
      %p327 = scmp.eq.s32.totalorder %s29, 0
      %p328 = por %p326, %p327
      %s329 = ssub.s32 %s31, %s38
      %p330 = scmp.eq.s32.totalorder %s329, 0
      %s332 = sadd.s32 %s331, 1
      %s333 = scalar_select %p330, %s331, %s332
      %p336 = pneg %p330
      %p337 = scmp.eq.s32.totalorder %s23, 1
      %p338 = por %p336, %p337
      %p339 = scmp.ne.s32.totalorder %s331, %s334
      %p340 = scmp.eq.s32.totalorder %s23, 0
      %p341 = por %p339, %p340
      %p342 = scmp.ne.s32.totalorder %s331, %s334
      %p343 = scmp.eq.s32.totalorder %s28, 1
      %p344 = por %p342, %p343
      %p345 = scmp.ne.s32.totalorder %s334, %s335
      %p346 = scmp.eq.s32.totalorder %s28, 0
      %p347 = por %p345, %p346
      %p348 = scmp.ne.s32.totalorder %s334, %s335
      %p349 = scmp.eq.s32.totalorder %s29, 1
      %p350 = por %p348, %p349
      %p352 = scmp.ne.s32.totalorder %s335, %s351
      %p353 = scmp.eq.s32.totalorder %s29, 0
      %p354 = por %p352, %p353
      %s355 = ssub.s32 %s31, %s38
      %p356 = scmp.eq.s32.totalorder %s355, 0
      %s358 = sadd.s32 %s357, 1
      %s359 = scalar_select %p356, %s357, %s358
      %p362 = pneg %p356
      %p363 = scmp.eq.s32.totalorder %s23, 1
      %p364 = por %p362, %p363
      %p365 = scmp.ne.s32.totalorder %s357, %s360
      %p366 = scmp.eq.s32.totalorder %s23, 0
      %p367 = por %p365, %p366
      %p368 = scmp.ne.s32.totalorder %s357, %s360
      %p369 = scmp.eq.s32.totalorder %s28, 1
      %p370 = por %p368, %p369
      %p371 = scmp.ne.s32.totalorder %s360, %s361
      %p372 = scmp.eq.s32.totalorder %s28, 0
      %p373 = por %p371, %p372
      %p374 = scmp.ne.s32.totalorder %s360, %s361
      %p375 = scmp.eq.s32.totalorder %s29, 1
      %p376 = por %p374, %p375
      %p378 = scmp.ne.s32.totalorder %s361, %s377
      %p379 = scmp.eq.s32.totalorder %s29, 0
      %p380 = por %p378, %p379
      %s381 = ssub.s32 %s31, %s38
      %p382 = scmp.eq.s32.totalorder %s381, 0
      %s384 = sadd.s32 %s383, 1
      %s385 = scalar_select %p382, %s383, %s384
      %p388 = pneg %p382
      %p389 = scmp.eq.s32.totalorder %s23, 1
      %p390 = por %p388, %p389
      %p391 = scmp.ne.s32.totalorder %s383, %s386
      %p392 = scmp.eq.s32.totalorder %s23, 0
      %p393 = por %p391, %p392
      %p394 = scmp.ne.s32.totalorder %s383, %s386
      %p395 = scmp.eq.s32.totalorder %s28, 1
      %p396 = por %p394, %p395
      %p397 = scmp.ne.s32.totalorder %s386, %s387
      %p398 = scmp.eq.s32.totalorder %s28, 0
      %p399 = por %p397, %p398
      %p400 = scmp.ne.s32.totalorder %s386, %s387
      %p401 = scmp.eq.s32.totalorder %s29, 1
      %p402 = por %p400, %p401
      %p404 = scmp.ne.s32.totalorder %s387, %s403
      %p405 = scmp.eq.s32.totalorder %s29, 0
      %p406 = por %p404, %p405
      %s407 = ssub.s32 %s30, %s42
      %p408 = scmp.eq.s32.totalorder %s407, 0
      %s410 = sadd.s32 %s409, 1
      %s411 = scalar_select %p408, %s409, %s410
      %p414 = pneg %p408
      %p415 = scmp.eq.s32.totalorder %s23, 1
      %p416 = por %p414, %p415
      %p417 = scmp.ne.s32.totalorder %s409, %s412
      %p418 = scmp.eq.s32.totalorder %s23, 0
      %p419 = por %p417, %p418
      %p420 = scmp.ne.s32.totalorder %s409, %s412
      %p421 = scmp.eq.s32.totalorder %s28, 1
      %p422 = por %p420, %p421
      %p423 = scmp.ne.s32.totalorder %s412, %s413
      %p424 = scmp.eq.s32.totalorder %s28, 0
      %p425 = por %p423, %p424
      %p426 = scmp.ne.s32.totalorder %s412, %s413
      %p427 = scmp.eq.s32.totalorder %s29, 1
      %p428 = por %p426, %p427
      %p430 = scmp.ne.s32.totalorder %s413, %s429
      %p431 = scmp.eq.s32.totalorder %s29, 0
      %p432 = por %p430, %p431
      %p433 = scmp.le.s32.totalorder 1, %s23
      %p434 = scmp.lt.s32.totalorder %s23, 3
      %p435 = pnand %p433, %p434
      %p436 = pneg %p435
      // Predicated region
      $region9: #{tpu_custom_call.1} parent=5 // pred_check
        _
      $region10: #{tpu_custom_call.1} parent=5 // pred_check_branch
        %438 = sbr.rel (%p435) target = $region12
      $region11: #{tpu_custom_call.1} parent=5 // pred_region
        %s439 = ssub.s32 %s23, 1
        // Predicated region
        $region13: #{tpu_custom_call.1} parent=11 // pred_check
          %p440 = pneg %p61
        $region14: #{tpu_custom_call.1} parent=11 // pred_check_branch
          %442 = sbr.rel (%p440) target = $region16
        $region15: #{tpu_custom_call.1} parent=11 // pred_region
          %s443 = smul.u32 2, %s32
          %s445 = ssub.s32 256, 256
          %446 = vsyncadd [#allocation4], %s445
          %s447 = smul.addr %s443, 128
          %s448 = scalar_lea.hbm %s0, %s447
          %s449 = sshll.u32 [#allocation3], 4
          %s450 = int_to_ptr.vmem [resolvable:$true] %s449
          %455 = dma.hbm_to_vmem [thread:$0]  %s448, 256, %s450, [#allocation4], 128, 128, 8
        $region16: #{tpu_custom_call.1} parent=11 // pred_fallthru
          _
        // Predicated region
        $region17: #{tpu_custom_call.1} parent=11 // pred_check
          %p456 = pneg %p87
        $region18: #{tpu_custom_call.1} parent=11 // pred_check_branch
          %458 = sbr.rel (%p456) target = $region20
        $region19: #{tpu_custom_call.1} parent=11 // pred_region
          %s459 = smul.u32 2, %s32
          %s461 = ssub.s32 32, 32
          %462 = vsyncadd [#allocation7], %s461
          %s463 = smul.addr %s459, 16
          %s464 = scalar_lea.hbm %s1, %s463
          %s465 = sshll.u32 [#allocation6], 4
          %s466 = int_to_ptr.vmem [resolvable:$true] %s465
          %471 = dma.hbm_to_vmem [thread:$0]  %s464, 32, %s466, [#allocation7], 16, 16, 1
        $region20: #{tpu_custom_call.1} parent=11 // pred_fallthru
          _
      $region12: #{tpu_custom_call.1} parent=5 // pred_fallthru
        _
      %p472 = scmp.lt.s32.totalorder %s23, 2
      // Predicated region
      $region21: #{tpu_custom_call.1} parent=5 // pred_check
        %p473 = pneg %p472
      $region22: #{tpu_custom_call.1} parent=5 // pred_check_branch
        %475 = sbr.rel (%p473) target = $region24
      $region23: #{tpu_custom_call.1} parent=5 // pred_region
        // Predicated region
        $region25: #{tpu_custom_call.1} parent=23 // pred_check
          %p476 = pneg %p107
        $region26: #{tpu_custom_call.1} parent=23 // pred_check_branch
          %478 = sbr.rel (%p476) target = $region28
        $region27: #{tpu_custom_call.1} parent=23 // pred_region
          %s479 = sand.u32 %s23, 1
          %s480 = scalar_lea.sflag [#allocation4], %s479
          %s481 = sand.u32 %s97, 1
          %s482 = smul.addr %s481, 192
          %s483 = scalar_lea.vmem [#allocation8], %s482
          %s485 = ssub.s32 3072, 3072
          %486 = vsyncadd %s480, %s485
          %s487 = smul.addr %s31, 48
          %s488 = smul.addr %s487, 64
          %s489 = scalar_lea.hbm %s2, %s488
          %s490 = sshll.u32 %s483, 4
          %s491 = int_to_ptr.vmem [resolvable:$true] %s490
          %496 = dma.hbm_to_vmem [thread:$0]  %s489, 3072, %s491, %s480, 192, 192, 12
        $region28: #{tpu_custom_call.1} parent=23 // pred_fallthru
          _
        // Predicated region
        $region29: #{tpu_custom_call.1} parent=23 // pred_check
          %p497 = pneg %p133
        $region30: #{tpu_custom_call.1} parent=23 // pred_check_branch
          %499 = sbr.rel (%p497) target = $region32
        $region31: #{tpu_custom_call.1} parent=23 // pred_region
          %s500 = sand.u32 %s23, 1
          %s501 = scalar_lea.sflag [#allocation4], %s500
          %s502 = sand.u32 %s123, 1
          %s503 = smul.addr %s502, 3
          %s504 = scalar_lea.vmem [#allocation9], %s503
          %s506 = ssub.s32 48, 48
          %507 = vsyncadd %s501, %s506
          %s508 = smul.addr %s31, 3
          %s509 = smul.addr %s508, 16
          %s510 = scalar_lea.hbm %s3, %s509
          %s512 = sshll.u32 %s504, 4
          %s513 = int_to_ptr.vmem [resolvable:$true] %s512
          %515 = dma.hbm_to_vmem [thread:$0]  %s510, 48, %s513, %s501
        $region32: #{tpu_custom_call.1} parent=23 // pred_fallthru
          _
        // Predicated region
        $region33: #{tpu_custom_call.1} parent=23 // pred_check
          %p516 = pneg %p159
        $region34: #{tpu_custom_call.1} parent=23 // pred_check_branch
          %518 = sbr.rel (%p516) target = $region36
        $region35: #{tpu_custom_call.1} parent=23 // pred_region
          %s519 = sand.u32 %s23, 1
          %s520 = scalar_lea.sflag [#allocation4], %s519
          %s521 = sand.u32 %s149, 1
          %s522 = smul.addr %s521, 64
          %s523 = scalar_lea.vmem [#allocation10], %s522
          %s525 = ssub.s32 1024, 1024
          %526 = vsyncadd %s520, %s525
          %s527 = smul.addr %s31, 16
          %s528 = smul.addr %s527, 64
          %s529 = scalar_lea.hbm %s4, %s528
          %s530 = sshll.u32 %s523, 4
          %s531 = int_to_ptr.vmem [resolvable:$true] %s530
          %536 = dma.hbm_to_vmem [thread:$0]  %s529, 1024, %s531, %s520, 64, 64, 4
        $region36: #{tpu_custom_call.1} parent=23 // pred_fallthru
          _
        // Predicated region
        $region37: #{tpu_custom_call.1} parent=23 // pred_check
          %p537 = pneg %p185
        $region38: #{tpu_custom_call.1} parent=23 // pred_check_branch
          %539 = sbr.rel (%p537) target = $region40
        $region39: #{tpu_custom_call.1} parent=23 // pred_region
          %p540 = scmp.lt.s32.totalorder %s31, 1
          %s541 = scalar_select %p540, %s31, 1
          %s542 = scalar_lea.vmem %s5, %s541
        $region40: #{tpu_custom_call.1} parent=23 // pred_fallthru
          _
        // Predicated region
        $region41: #{tpu_custom_call.1} parent=23 // pred_check
          %p543 = pneg %p211
        $region42: #{tpu_custom_call.1} parent=23 // pred_check_branch
          %545 = sbr.rel (%p543) target = $region44
        $region43: #{tpu_custom_call.1} parent=23 // pred_region
          %p546 = scmp.lt.s32.totalorder %s31, 1
          %s547 = scalar_select %p546, %s31, 1
          %s548 = scalar_lea.vmem %s6, %s547
        $region44: #{tpu_custom_call.1} parent=23 // pred_fallthru
          _
        // Predicated region
        $region45: #{tpu_custom_call.1} parent=23 // pred_check
          %p549 = pneg %p237
        $region46: #{tpu_custom_call.1} parent=23 // pred_check_branch
          %551 = sbr.rel (%p549) target = $region48
        $region47: #{tpu_custom_call.1} parent=23 // pred_region
          %p552 = scmp.lt.s32.totalorder %s31, 1
          %s553 = scalar_select %p552, %s31, 1
          %s554 = scalar_lea.vmem %s7, %s553
        $region48: #{tpu_custom_call.1} parent=23 // pred_fallthru
          _
        // Predicated region
        $region49: #{tpu_custom_call.1} parent=23 // pred_check
          %p555 = pneg %p263
        $region50: #{tpu_custom_call.1} parent=23 // pred_check_branch
          %557 = sbr.rel (%p555) target = $region52
        $region51: #{tpu_custom_call.1} parent=23 // pred_region
          %s558 = sand.u32 %s23, 1
          %s559 = scalar_lea.sflag [#allocation4], %s558
          %s560 = sand.u32 %s253, 1
          %s561 = smul.addr %s560, 64
          %s562 = scalar_lea.vmem [#allocation11], %s561
          %s564 = ssub.s32 1024, 1024
          %565 = vsyncadd %s559, %s564
          %s566 = smul.addr %s31, 16
          %s567 = smul.addr %s566, 64
          %s568 = scalar_lea.hbm %s8, %s567
          %s569 = sshll.u32 %s562, 4
          %s570 = int_to_ptr.vmem [resolvable:$true] %s569
          %575 = dma.hbm_to_vmem [thread:$0]  %s568, 1024, %s570, %s559, 64, 64, 4
        $region52: #{tpu_custom_call.1} parent=23 // pred_fallthru
          _
        // Predicated region
        $region53: #{tpu_custom_call.1} parent=23 // pred_check
          %p576 = pneg %p289
        $region54: #{tpu_custom_call.1} parent=23 // pred_check_branch
          %578 = sbr.rel (%p576) target = $region56
        $region55: #{tpu_custom_call.1} parent=23 // pred_region
          %p579 = scmp.lt.s32.totalorder %s31, 1
          %s580 = scalar_select %p579, %s31, 1
          %s581 = scalar_lea.vmem %s9, %s580
        $region56: #{tpu_custom_call.1} parent=23 // pred_fallthru
          _
        // Predicated region
        $region57: #{tpu_custom_call.1} parent=23 // pred_check
          %p582 = pneg %p315
        $region58: #{tpu_custom_call.1} parent=23 // pred_check_branch
          %584 = sbr.rel (%p582) target = $region60
        $region59: #{tpu_custom_call.1} parent=23 // pred_region
          %s585 = sand.u32 %s23, 1
          %s586 = scalar_lea.sflag [#allocation4], %s585
          %s587 = sand.u32 %s305, 1
          %s588 = smul.addr %s587, 64
          %s589 = scalar_lea.vmem [#allocation12], %s588
          %s591 = ssub.s32 1024, 1024
          %592 = vsyncadd %s586, %s591
          %s593 = smul.addr %s31, 16
          %s594 = smul.addr %s593, 64
          %s595 = scalar_lea.hbm %s10, %s594
          %s596 = sshll.u32 %s589, 4
          %s597 = int_to_ptr.vmem [resolvable:$true] %s596
          %602 = dma.hbm_to_vmem [thread:$0]  %s595, 1024, %s597, %s586, 64, 64, 4
        $region60: #{tpu_custom_call.1} parent=23 // pred_fallthru
          _
        // Predicated region
        $region61: #{tpu_custom_call.1} parent=23 // pred_check
          %p603 = pneg %p341
        $region62: #{tpu_custom_call.1} parent=23 // pred_check_branch
          %605 = sbr.rel (%p603) target = $region64
        $region63: #{tpu_custom_call.1} parent=23 // pred_region
          %p606 = scmp.lt.s32.totalorder %s31, 1
          %s607 = scalar_select %p606, %s31, 1
          %s608 = scalar_lea.vmem %s11, %s607
        $region64: #{tpu_custom_call.1} parent=23 // pred_fallthru
          _
        // Predicated region
        $region65: #{tpu_custom_call.1} parent=23 // pred_check
          %p609 = pneg %p367
        $region66: #{tpu_custom_call.1} parent=23 // pred_check_branch
          %611 = sbr.rel (%p609) target = $region68
        $region67: #{tpu_custom_call.1} parent=23 // pred_region
          %p612 = scmp.lt.s32.totalorder %s31, 1
          %s613 = scalar_select %p612, %s31, 1
          %s614 = scalar_lea.vmem %s12, %s613
        $region68: #{tpu_custom_call.1} parent=23 // pred_fallthru
          _
        // Predicated region
        $region69: #{tpu_custom_call.1} parent=23 // pred_check
          %p615 = pneg %p393
        $region70: #{tpu_custom_call.1} parent=23 // pred_check_branch
          %617 = sbr.rel (%p615) target = $region72
        $region71: #{tpu_custom_call.1} parent=23 // pred_region
          %p618 = scmp.lt.s32.totalorder %s31, 1
          %s619 = scalar_select %p618, %s31, 1
          %s620 = scalar_lea.vmem %s13, %s619
        $region72: #{tpu_custom_call.1} parent=23 // pred_fallthru
          _
      $region24: #{tpu_custom_call.1} parent=5 // pred_fallthru
        _
      %p621 = scmp.le.s32.totalorder 1, %s23
      %p622 = scmp.lt.s32.totalorder %s23, 3
      %p623 = pnand %p621, %p622
      %p624 = pneg %p623
      // Predicated region
      $region73: #{tpu_custom_call.1} parent=5 // pred_check
        _
      $region74: #{tpu_custom_call.1} parent=5 // pred_check_branch
        %626 = sbr.rel (%p623) target = $region76
      $region75: #{tpu_custom_call.1} parent=5 // pred_region
        %s627 = ssub.s32 %s23, 1
        // Predicated region
        $region77: #{tpu_custom_call.1} parent=75 // pred_check
          %p628 = pneg %p61
        $region78: #{tpu_custom_call.1} parent=75 // pred_check_branch
          %630 = sbr.rel (%p628) target = $region80
        $region79: #{tpu_custom_call.1} parent=75 // pred_region
          %631 = dma.done [#allocation4], 256
        $region80: #{tpu_custom_call.1} parent=75 // pred_fallthru
          _
        // Predicated region
        $region81: #{tpu_custom_call.1} parent=75 // pred_check
          %p632 = pneg %p87
        $region82: #{tpu_custom_call.1} parent=75 // pred_check_branch
          %634 = sbr.rel (%p632) target = $region84
        $region83: #{tpu_custom_call.1} parent=75 // pred_region
          %635 = dma.done [#allocation7], 32
        $region84: #{tpu_custom_call.1} parent=75 // pred_fallthru
          _
        %s636 = sand.u32 %s28, 1
        %s637 = scalar_lea.sflag [#allocation4], %s636
        %s638 = sand.u32 %s100, 1
        %s639 = smul.addr %s638, 192
        %s640 = scalar_lea.vmem [#allocation8], %s639
        // Predicated region
        $region85: #{tpu_custom_call.1} parent=75 // pred_check
          %p641 = pneg %p113
        $region86: #{tpu_custom_call.1} parent=75 // pred_check_branch
          %643 = sbr.rel (%p641) target = $region88
        $region87: #{tpu_custom_call.1} parent=75 // pred_region
          %644 = dma.done %s637, 3072
        $region88: #{tpu_custom_call.1} parent=75 // pred_fallthru
          _
        %s645 = sand.u32 %s28, 1
        %s646 = scalar_lea.sflag [#allocation4], %s645
        %s647 = sand.u32 %s126, 1
        %s648 = smul.addr %s647, 3
        %s649 = scalar_lea.vmem [#allocation9], %s648
        // Predicated region
        $region89: #{tpu_custom_call.1} parent=75 // pred_check
          %p650 = pneg %p139
        $region90: #{tpu_custom_call.1} parent=75 // pred_check_branch
          %652 = sbr.rel (%p650) target = $region92
        $region91: #{tpu_custom_call.1} parent=75 // pred_region
          %653 = dma.done %s646, 48
        $region92: #{tpu_custom_call.1} parent=75 // pred_fallthru
          _
        %s654 = sand.u32 %s28, 1
        %s655 = scalar_lea.sflag [#allocation4], %s654
        %s656 = sand.u32 %s152, 1
        %s657 = smul.addr %s656, 64
        %s658 = scalar_lea.vmem [#allocation10], %s657
        // Predicated region
        $region93: #{tpu_custom_call.1} parent=75 // pred_check
          %p659 = pneg %p165
        $region94: #{tpu_custom_call.1} parent=75 // pred_check_branch
          %661 = sbr.rel (%p659) target = $region96
        $region95: #{tpu_custom_call.1} parent=75 // pred_region
          %662 = dma.done %s655, 1024
        $region96: #{tpu_custom_call.1} parent=75 // pred_fallthru
          _
        %s663 = sand.u32 %s28, 1
        %s664 = scalar_lea.sflag [#allocation4], %s663
        %s665 = sand.u32 %s256, 1
        %s666 = smul.addr %s665, 64
        %s667 = scalar_lea.vmem [#allocation11], %s666
        // Predicated region
        $region97: #{tpu_custom_call.1} parent=75 // pred_check
          %p668 = pneg %p269
        $region98: #{tpu_custom_call.1} parent=75 // pred_check_branch
          %670 = sbr.rel (%p668) target = $region100
        $region99: #{tpu_custom_call.1} parent=75 // pred_region
          %671 = dma.done %s664, 1024
        $region100: #{tpu_custom_call.1} parent=75 // pred_fallthru
          _
        %s672 = sand.u32 %s28, 1
        %s673 = scalar_lea.sflag [#allocation4], %s672
        %s674 = sand.u32 %s308, 1
        %s675 = smul.addr %s674, 64
        %s676 = scalar_lea.vmem [#allocation12], %s675
        // Predicated region
        $region101: #{tpu_custom_call.1} parent=75 // pred_check
          %p677 = pneg %p321
        $region102: #{tpu_custom_call.1} parent=75 // pred_check_branch
          %679 = sbr.rel (%p677) target = $region104
        $region103: #{tpu_custom_call.1} parent=75 // pred_region
          %680 = dma.done %s673, 1024
        $region104: #{tpu_custom_call.1} parent=75 // pred_fallthru
          _
        %p681 = pneg %p61
        %p682 = pneg %p58
        %p683 = pneg %p87
        %p684 = pneg %p84
        %s685 = sand.u32 %s28, 1
        %s686 = scalar_lea.sflag [#allocation4], %s685
        %s687 = sand.u32 %s100, 1
        %s688 = smul.addr %s687, 192
        %s689 = scalar_lea.vmem [#allocation8], %s688
        %p690 = pneg %p113
        %p691 = pneg %p110
        %s692 = sand.u32 %s28, 1
        %s693 = scalar_lea.sflag [#allocation4], %s692
        %s694 = sand.u32 %s126, 1
        %s695 = smul.addr %s694, 3
        %s696 = scalar_lea.vmem [#allocation9], %s695
        %p697 = pneg %p139
        %p698 = pneg %p136
        %s699 = sand.u32 %s28, 1
        %s700 = scalar_lea.sflag [#allocation4], %s699
        %s701 = sand.u32 %s152, 1
        %s702 = smul.addr %s701, 64
        %s703 = scalar_lea.vmem [#allocation10], %s702
        %p704 = pneg %p165
        %p705 = pneg %p162
        %p706 = scmp.lt.s32.totalorder %s33, 1
        %s707 = scalar_select %p706, %s33, 1
        %s708 = scalar_lea.vmem %s5, %s707
        %p709 = pneg %p191
        %p710 = pneg %p188
        %p711 = scmp.lt.s32.totalorder %s33, 1
        %s712 = scalar_select %p711, %s33, 1
        %s713 = scalar_lea.vmem %s6, %s712
        %p714 = pneg %p217
        %p715 = pneg %p214
        %p716 = scmp.lt.s32.totalorder %s33, 1
        %s717 = scalar_select %p716, %s33, 1
        %s718 = scalar_lea.vmem %s7, %s717
        %p719 = pneg %p243
        %p720 = pneg %p240
        %s721 = sand.u32 %s28, 1
        %s722 = scalar_lea.sflag [#allocation4], %s721
        %s723 = sand.u32 %s256, 1
        %s724 = smul.addr %s723, 64
        %s725 = scalar_lea.vmem [#allocation11], %s724
        %p726 = pneg %p269
        %p727 = pneg %p266
        %p728 = scmp.lt.s32.totalorder %s33, 1
        %s729 = scalar_select %p728, %s33, 1
        %s730 = scalar_lea.vmem %s9, %s729
        %p731 = pneg %p295
        %p732 = pneg %p292
        %s733 = sand.u32 %s28, 1
        %s734 = scalar_lea.sflag [#allocation4], %s733
        %s735 = sand.u32 %s308, 1
        %s736 = smul.addr %s735, 64
        %s737 = scalar_lea.vmem [#allocation12], %s736
        %p738 = pneg %p321
        %p739 = pneg %p318
        %p740 = scmp.lt.s32.totalorder %s33, 1
        %s741 = scalar_select %p740, %s33, 1
        %s742 = scalar_lea.vmem %s11, %s741
        %p743 = pneg %p347
        %p744 = pneg %p344
        %p745 = scmp.lt.s32.totalorder %s33, 1
        %s746 = scalar_select %p745, %s33, 1
        %s747 = scalar_lea.vmem %s12, %s746
        %p748 = pneg %p373
        %p749 = pneg %p370
        %p750 = scmp.lt.s32.totalorder %s33, 1
        %s751 = scalar_select %p750, %s33, 1
        %s752 = scalar_lea.vmem %s13, %s751
        %p753 = pneg %p399
        %p754 = pneg %p396
        %p755 = pneg %p425
        %p756 = pneg %p422
        %s757 = smul.u32 2, %s32
        %s758 = smul.u32 2, %s32
        %p759 = scmp.lt.s32.totalorder %s33, 1
        %s760 = scalar_select %p759, %s33, 1
        %s761 = scalar_lea.vmem %s5, %s760
        %p762 = scmp.lt.s32.totalorder %s33, 1
        %s763 = scalar_select %p762, %s33, 1
        %s764 = scalar_lea.vmem %s6, %s763
        %p765 = scmp.lt.s32.totalorder %s33, 1
        %s766 = scalar_select %p765, %s33, 1
        %s767 = scalar_lea.vmem %s7, %s766
        %p768 = scmp.lt.s32.totalorder %s33, 1
        %s769 = scalar_select %p768, %s33, 1
        %s770 = scalar_lea.vmem %s9, %s769
        %p771 = scmp.lt.s32.totalorder %s33, 1
        %s772 = scalar_select %p771, %s33, 1
        %s773 = scalar_lea.vmem %s11, %s772
        %p774 = scmp.lt.s32.totalorder %s33, 1
        %s775 = scalar_select %p774, %s33, 1
        %s776 = scalar_lea.vmem %s12, %s775
        %p777 = scmp.lt.s32.totalorder %s33, 1
        %s778 = scalar_select %p777, %s33, 1
        %s779 = scalar_lea.vmem %s13, %s778
        %s780 = smul.u32 2, %s32
        %p782 = scmp.eq.s32.totalorder %s33, 0
        // Predicated region
        $region105: #{tpu_custom_call.1} parent=75 // pred_check
          %p783 = pneg %p782
        $region106: #{tpu_custom_call.1} parent=75 // pred_check_branch
          %785 = sbr.rel (%p783) target = $region108
        $region107: #{tpu_custom_call.1} parent=75 // pred_region
          %v786 = vld [vmem:[#allocation3] sm:$0xff]
          %v787 = vld [vmem:[#allocation3 + $0x8] sm:$0xff]
          %788 = vst [vmem:[#allocation2] sm:$0xff] %v786
          %789 = vst [vmem:[#allocation2 + $0x8] sm:$0xff] %v787
        $region108: #{tpu_custom_call.1} parent=75 // pred_fallthru
          _
        %v790 = vld [vmem:[#allocation2] sm:$0xff]
        %v791 = vld [vmem:[#allocation2 + $0x8] sm:$0xff]
        %v792 = vld [vmem:[#allocation6] sm:$0x1]
        %v793 = vld [vmem:[#allocation6 + $0x1] sm:$0x1]
        %vm794 = vcmp.gt.f32.partialorder %v792, 0.0
        %vm795 = vcmp.gt.f32.partialorder %v793, 0.0
        %v796 = vlaneseq
        %v797 = vand.u32 %v796, 127
        %vm798 = vcmp.lt.s32.totalorder %v797, 32
        %v799 = vpack.c.bf16 %v791, %v790
        %v800 = vld [vmem:[%s640] sm:$0xff]
        %v801 = vld [vmem:[%s640 + $0x8] sm:$0xf]
        %v802 = vld [vmem:[%s640 + $0xc] sm:$0xff]
        %v803 = vld [vmem:[%s640 + $0x14] sm:$0xf]
        %v804 = vld [vmem:[%s640 + $0x18] sm:$0xff]
        %v805 = vld [vmem:[%s640 + $0x20] sm:$0xf]
        %v806 = vld [vmem:[%s640 + $0x24] sm:$0xff]
        %v807 = vld [vmem:[%s640 + $0x2c] sm:$0xf]
        %v808 = vld [vmem:[%s640 + $0x30] sm:$0xff]
        %v809 = vld [vmem:[%s640 + $0x38] sm:$0xf]
        %v810 = vld [vmem:[%s640 + $0x3c] sm:$0xff]
        %v811 = vld [vmem:[%s640 + $0x44] sm:$0xf]
        %v812 = vld [vmem:[%s640 + $0x48] sm:$0xff]
        %v813 = vld [vmem:[%s640 + $0x50] sm:$0xf]
        %v814 = vld [vmem:[%s640 + $0x54] sm:$0xff]
        %v815 = vld [vmem:[%s640 + $0x5c] sm:$0xf]
        %v816 = vld [vmem:[%s640 + $0x60] sm:$0xff]
        %v817 = vld [vmem:[%s640 + $0x68] sm:$0xf]
        %v818 = vld [vmem:[%s640 + $0x6c] sm:$0xff]
        %v819 = vld [vmem:[%s640 + $0x74] sm:$0xf]
        %v820 = vld [vmem:[%s640 + $0x78] sm:$0xff]
        %v821 = vld [vmem:[%s640 + $0x80] sm:$0xf]
        %v822 = vld [vmem:[%s640 + $0x84] sm:$0xff]
        %v823 = vld [vmem:[%s640 + $0x8c] sm:$0xf]
        %v824 = vld [vmem:[%s640 + $0x90] sm:$0xff]
        %v825 = vld [vmem:[%s640 + $0x98] sm:$0xf]
        %v826 = vld [vmem:[%s640 + $0x9c] sm:$0xff]
        %v827 = vld [vmem:[%s640 + $0xa4] sm:$0xf]
        %v828 = vld [vmem:[%s640 + $0xa8] sm:$0xff]
        %v829 = vld [vmem:[%s640 + $0xb0] sm:$0xf]
        %v830 = vld [vmem:[%s640 + $0xb4] sm:$0xff]
        %v831 = vld [vmem:[%s640 + $0xbc] sm:$0xf]
        %v832 = vld [vmem:[%s649] sm:$0x7]
        %v834 = vlaneseq
        %v835 = vshrl.u32 %v834, 7
        %v836 = vsub.s32 0, %v835
        %v837 = vrot.slane %v832, %v836
        %v838 = vlaneseq
        %v839 = vshrl.u32 %v838, 7
        %v840 = vsub.s32 1, %v839
        %v841 = vrot.slane %v832, %v840
        %v842 = vlaneseq
        %v843 = vshrl.u32 %v842, 7
        %v844 = vsub.s32 2, %v843
        %v845 = vrot.slane %v832, %v844
        %v881 = vunpack.c.l.b16 %v800
        %v882 = vunpack.c.h.b16 %v800
        %v883 = vunpack.c.l.b16 %v801
        %v884 = vunpack.c.l.b16 %v802
        %v885 = vunpack.c.h.b16 %v802
        %v886 = vunpack.c.l.b16 %v803
        %v887 = vunpack.c.l.b16 %v804
        %v888 = vunpack.c.h.b16 %v804
        %v889 = vunpack.c.l.b16 %v805
        %v890 = vunpack.c.l.b16 %v806
        %v891 = vunpack.c.h.b16 %v806
        %v892 = vunpack.c.l.b16 %v807
        %v893 = vunpack.c.l.b16 %v808
        %v894 = vunpack.c.h.b16 %v808
        %v895 = vunpack.c.l.b16 %v809
        %v896 = vunpack.c.l.b16 %v810
        %v897 = vunpack.c.h.b16 %v810
        %v898 = vunpack.c.l.b16 %v811
        %v899 = vunpack.c.l.b16 %v812
        %v900 = vunpack.c.h.b16 %v812
        %v901 = vunpack.c.l.b16 %v813
        %v902 = vunpack.c.l.b16 %v814
        %v903 = vunpack.c.h.b16 %v814
        %v904 = vunpack.c.l.b16 %v815
        %v905 = vunpack.c.l.b16 %v816
        %v906 = vunpack.c.h.b16 %v816
        %v907 = vunpack.c.l.b16 %v817
        %v908 = vunpack.c.l.b16 %v818
        %v909 = vunpack.c.h.b16 %v818
        %v910 = vunpack.c.l.b16 %v819
        %v911 = vunpack.c.l.b16 %v820
        %v912 = vunpack.c.h.b16 %v820
        %v913 = vunpack.c.l.b16 %v821
        %v914 = vunpack.c.l.b16 %v822
        %v915 = vunpack.c.h.b16 %v822
        %v916 = vunpack.c.l.b16 %v823
        %v917 = vunpack.c.l.b16 %v824
        %v918 = vunpack.c.h.b16 %v824
        %v919 = vunpack.c.l.b16 %v825
        %v920 = vunpack.c.l.b16 %v826
        %v921 = vunpack.c.h.b16 %v826
        %v922 = vunpack.c.l.b16 %v827
        %v923 = vunpack.c.l.b16 %v828
        %v924 = vunpack.c.h.b16 %v828
        %v925 = vunpack.c.l.b16 %v829
        %v926 = vunpack.c.l.b16 %v830
        %v927 = vunpack.c.h.b16 %v830
        %v928 = vunpack.c.l.b16 %v831
        %v929 = vpack.c.b16 %v884, %v881
        %v930 = vpack.c.b16 %v885, %v882
        %v931 = vpack.c.b16 %v886, %v883
        %v932 = vpack.c.b16 %v890, %v887
        %v933 = vpack.c.b16 %v891, %v888
        %v934 = vpack.c.b16 %v892, %v889
        %v935 = vpack.c.b16 %v896, %v893
        %v936 = vpack.c.b16 %v897, %v894
        %v937 = vpack.c.b16 %v898, %v895
        %v938 = vpack.c.b16 %v902, %v899
        %v939 = vpack.c.b16 %v903, %v900
        %v940 = vpack.c.b16 %v904, %v901
        %v941 = vpack.c.b16 %v908, %v905
        %v942 = vpack.c.b16 %v909, %v906
        %v943 = vpack.c.b16 %v910, %v907
        %v944 = vpack.c.b16 %v914, %v911
        %v945 = vpack.c.b16 %v915, %v912
        %v946 = vpack.c.b16 %v916, %v913
        %v947 = vpack.c.b16 %v920, %v917
        %v948 = vpack.c.b16 %v921, %v918
        %v949 = vpack.c.b16 %v922, %v919
        %v950 = vpack.c.b16 %v926, %v923
        %v951 = vpack.c.b16 %v927, %v924
        %v952 = vpack.c.b16 %v928, %v925
        %977 = vmatprep.subr.bf16.mxu0 %v951
        %978 = vmatpush1.bf16.msra.mxu0 %v950
        %979 = vmatprep.subr.bf16.mxu0 %v948
        %980 = vmatpush1.bf16.msra.mxu0 %v947
        %981 = vmatprep.subr.bf16.mxu0 %v945
        %982 = vmatpush1.bf16.msra.mxu0 %v944
        %983 = vmatprep.subr.bf16.mxu0 %v942
        %984 = vmatpush1.bf16.msra.mxu0 %v941
        %985 = vmatprep.subr.bf16.mxu0 %v939
        %986 = vmatpush1.bf16.msra.mxu0 %v938
        %987 = vmatprep.subr.bf16.mxu0 %v936
        %988 = vmatpush1.bf16.msra.mxu0 %v935
        %989 = vmatprep.subr.bf16.mxu0 %v933
        %990 = vmatpush1.bf16.msra.mxu0 %v932
        %991 = vmatprep.subr.bf16.mxu0 %v930
        %992 = vmatpush1.bf16.msra.mxu0 %v929
        %993 = vmatprep.subr.bf16.mxu0 0
        %994 = vmatpush2.bf16.msra.mxu0 0
        %995 = vmatprep.subr.bf16.mxu0 0
        %996 = vmatpush2.bf16.msra.mxu0 0
        %997 = vmatprep.subr.bf16.mxu0 0
        %998 = vmatpush2.bf16.msra.mxu0 0
        %999 = vmatprep.subr.bf16.mxu0 0
        %1000 = vmatpush2.bf16.msra.mxu0 0
        %1001 = vmatprep.subr.bf16.mxu0 0
        %1002 = vmatpush2.bf16.msra.mxu0 0
        %1003 = vmatprep.subr.bf16.mxu0 0
        %1004 = vmatpush2.bf16.msra.mxu0 0
        %1005 = vmatprep.subr.bf16.mxu0 0
        %1006 = vmatpush2.bf16.msra.mxu0 0
        %1007 = vmatprep.subr.bf16.mxu0 0
        %1008 = vmatpush2.bf16.msra.mxu0 0
        %1009 = vmatprep.mubr.bf16.mxu0 0
        %1010 = vmatmul.mubr.bf16.gmra.mxu0 %v799
        %v1011 = vpop.f32.mrf.mxu0
        %v1012 = vadd.f32 %v837, %v1011
        %v1013 = vpop.f32.mrf.mxu0
        %v1014 = vadd.f32 %v841, %v1013
        %v1015 = vpop.f32.mrf.mxu0
        %v1016 = vadd.f32 %v837, %v1015
        %v1017 = vpop.f32.mrf.mxu0
        %v1018 = vadd.f32 %v841, %v1017
        %1019 = vdwg.mxu0
        %1020 = vmatprep.subr.bf16.mxu0 0
        %1021 = vmatpush1.bf16.msra.mxu0 %v952
        %1022 = vmatprep.subr.bf16.mxu0 0
        %1023 = vmatpush1.bf16.msra.mxu0 %v949
        %1024 = vmatprep.subr.bf16.mxu0 0
        %1025 = vmatpush1.bf16.msra.mxu0 %v946
        %1026 = vmatprep.subr.bf16.mxu0 0
        %1027 = vmatpush1.bf16.msra.mxu0 %v943
        %1028 = vmatprep.subr.bf16.mxu0 0
        %1029 = vmatpush1.bf16.msra.mxu0 %v940
        %1030 = vmatprep.subr.bf16.mxu0 0
        %1031 = vmatpush1.bf16.msra.mxu0 %v937
        %1032 = vmatprep.subr.bf16.mxu0 0
        %1033 = vmatpush1.bf16.msra.mxu0 %v934
        %1034 = vmatprep.subr.bf16.mxu0 0
        %1035 = vmatpush1.bf16.msra.mxu0 %v931
        %1036 = vmatprep.subr.bf16.mxu0 0
        %1037 = vmatpush2.bf16.msra.mxu0 0
        %1038 = vmatprep.subr.bf16.mxu0 0
        %1039 = vmatpush2.bf16.msra.mxu0 0
        %1040 = vmatprep.subr.bf16.mxu0 0
        %1041 = vmatpush2.bf16.msra.mxu0 0
        %1042 = vmatprep.subr.bf16.mxu0 0
        %1043 = vmatpush2.bf16.msra.mxu0 0
        %1044 = vmatprep.subr.bf16.mxu0 0
        %1045 = vmatpush2.bf16.msra.mxu0 0
        %1046 = vmatprep.subr.bf16.mxu0 0
        %1047 = vmatpush2.bf16.msra.mxu0 0
        %1048 = vmatprep.subr.bf16.mxu0 0
        %1049 = vmatpush2.bf16.msra.mxu0 0
        %1050 = vmatprep.subr.bf16.mxu0 0
        %1051 = vmatpush2.bf16.msra.mxu0 0
        %1052 = vmatprep.mubr.bf16.mxu0 0
        %1053 = vmatmul.mubr.bf16.gmra.mxu0 %v799
        %v1054 = vpop.f32.mrf.mxu0
        %v1055 = vadd.f32 %v845, %v1054
        %v1056 = vpop.f32.mrf.mxu0
        %v1057 = vpop.f32.mrf.mxu0
        %v1058 = vadd.f32 %v845, %v1057
        %v1059 = vpop.f32.mrf.mxu0
        %1060 = vdwg.mxu0
        %v1061 = vpack.c.bf16 %v1014, %v1014
        %v1062 = vpack.c.bf16 %v1018, %v1018
        %vm1063 = vcmp.ge.s32.totalorder %v797, 0
        %vm1064 = vcmp.lt.s32.totalorder %v797, 16
        %vm1065 = vmand %vm1063, %vm1064
        %v1066 = vsel %vm1065, 1, 0
        %vm1067 = vcmp.eq.s32.totalorder %v1066, 1
        %v1068 = vsel %vm1067, %v1012, 0.0
        %v1069 = vsel %vm1067, %v1016, 0.0
        %v1070 = vpack.c.bf16 %v1068, %v1068
        %v1071 = vpack.c.bf16 %v1069, %v1069
        %1072 = vmatprep.subr.bf16.mxu0 0
        %1073 = vmatpush1.bf16.xpose.msra.mxu0 0
        %1074 = vmatprep.subr.bf16.mxu0 0
        %1075 = vmatpush1.bf16.xpose.msra.mxu0 0
        %1076 = vmatprep.subr.bf16.mxu0 0
        %1077 = vmatpush1.bf16.xpose.msra.mxu0 0
        %1078 = vmatprep.subr.bf16.mxu0 0
        %1079 = vmatpush1.bf16.xpose.msra.mxu0 0
        %1080 = vmatprep.subr.bf16.mxu0 0
        %1081 = vmatpush1.bf16.xpose.msra.mxu0 0
        %1082 = vmatprep.subr.bf16.mxu0 0
        %1083 = vmatpush1.bf16.xpose.msra.mxu0 0
        %1084 = vmatprep.subr.bf16.mxu0 0
        %1085 = vmatpush1.bf16.xpose.msra.mxu0 0
        %1086 = vmatprep.subr.bf16.mxu0 0
        %1087 = vmatpush1.bf16.xpose.msra.mxu0 %v1061
        %1088 = vmatprep.subr.bf16.mxu0 0
        %1089 = vmatpush2.bf16.xpose.msra.mxu0 0
        %1090 = vmatprep.subr.bf16.mxu0 0
        %1091 = vmatpush2.bf16.xpose.msra.mxu0 0
        %1092 = vmatprep.subr.bf16.mxu0 0
        %1093 = vmatpush2.bf16.xpose.msra.mxu0 0
        %1094 = vmatprep.subr.bf16.mxu0 0
        %1095 = vmatpush2.bf16.xpose.msra.mxu0 0
        %1096 = vmatprep.subr.bf16.mxu0 0
        %1097 = vmatpush2.bf16.xpose.msra.mxu0 0
        %1098 = vmatprep.subr.bf16.mxu0 0
        %1099 = vmatpush2.bf16.xpose.msra.mxu0 0
        %1100 = vmatprep.subr.bf16.mxu0 0
        %1101 = vmatpush2.bf16.xpose.msra.mxu0 0
        %1102 = vmatprep.subr.bf16.mxu0 0
        %1103 = vmatpush2.bf16.xpose.msra.mxu0 0
        %1104 = vmatprep.mubr.bf16.mxu0 0
        %1105 = vmatmul.mubr.bf16.gmra.mxu0 %v1070
        %v1106 = vpop.f32.mrf.mxu0
        %v1107 = vadd.f32 0.0, %v1106
        %v1108 = vpop.f32.mrf.mxu0
        %v1109 = vpop.f32.mrf.mxu0
        %v1110 = vpop.f32.mrf.mxu0
        %1111 = vdwg.mxu0
        %1112 = vmatprep.subr.bf16.mxu0 0
        %1113 = vmatpush1.bf16.xpose.msra.mxu0 0
        %1114 = vmatprep.subr.bf16.mxu0 0
        %1115 = vmatpush1.bf16.xpose.msra.mxu0 0
        %1116 = vmatprep.subr.bf16.mxu0 0
        %1117 = vmatpush1.bf16.xpose.msra.mxu0 0
        %1118 = vmatprep.subr.bf16.mxu0 0
        %1119 = vmatpush1.bf16.xpose.msra.mxu0 0
        %1120 = vmatprep.subr.bf16.mxu0 0
        %1121 = vmatpush1.bf16.xpose.msra.mxu0 0
        %1122 = vmatprep.subr.bf16.mxu0 0
        %1123 = vmatpush1.bf16.xpose.msra.mxu0 0
        %1124 = vmatprep.subr.bf16.mxu0 0
        %1125 = vmatpush1.bf16.xpose.msra.mxu0 0
        %1126 = vmatprep.subr.bf16.mxu0 0
        %1127 = vmatpush1.bf16.xpose.msra.mxu0 %v1062
        %1128 = vmatprep.subr.bf16.mxu0 0
        %1129 = vmatpush2.bf16.xpose.msra.mxu0 0
        %1130 = vmatprep.subr.bf16.mxu0 0
        %1131 = vmatpush2.bf16.xpose.msra.mxu0 0
        %1132 = vmatprep.subr.bf16.mxu0 0
        %1133 = vmatpush2.bf16.xpose.msra.mxu0 0
        %1134 = vmatprep.subr.bf16.mxu0 0
        %1135 = vmatpush2.bf16.xpose.msra.mxu0 0
        %1136 = vmatprep.subr.bf16.mxu0 0
        %1137 = vmatpush2.bf16.xpose.msra.mxu0 0
        %1138 = vmatprep.subr.bf16.mxu0 0
        %1139 = vmatpush2.bf16.xpose.msra.mxu0 0
        %1140 = vmatprep.subr.bf16.mxu0 0
        %1141 = vmatpush2.bf16.xpose.msra.mxu0 0
        %1142 = vmatprep.subr.bf16.mxu0 0
        %1143 = vmatpush2.bf16.xpose.msra.mxu0 0
        %1144 = vmatprep.mubr.bf16.mxu0 0
        %1145 = vmatmul.mubr.bf16.gmra.mxu0 %v1071
        %v1146 = vpop.f32.mrf.mxu0
        %v1147 = vadd.f32 0.0, %v1146
        %v1148 = vpop.f32.mrf.mxu0
        %v1149 = vpop.f32.mrf.mxu0
        %v1150 = vpop.f32.mrf.mxu0
        %1151 = vdwg.mxu0
        %v1152 = vmul.f32 %v1107, 0.25
        %v1153 = vmul.f32 %v1147, 0.25
        %v1154 = vsel %vm794, 1, 0
        %v1155 = vsel %vm795, 1, 0
        %v1156 = vlaneseq
        %v1157 = vshrl.u32 %v1156, 7
        %v1158 = vsub.s32 0, %v1157
        %v1159 = vrot.slane %v1154, %v1158
        %v1160 = vlaneseq
        %v1161 = vshrl.u32 %v1160, 7
        %v1162 = vsub.s32 0, %v1161
        %v1163 = vrot.slane %v1155, %v1162
        %vm1164 = vcmp.eq.s32.totalorder %v1159, 1
        %vm1165 = vcmp.eq.s32.totalorder %v1163, 1
        %v1166 = vsel %vm1164, %v1152, -1e+09
        %v1167 = vsel %vm1165, %v1153, -1e+09
        %vm1168 = vcmask 64512
        %v1169 = vsel %vm1168, %v1166, -inf
        %1170 = vmax.xlane.f32.xlu0 %v1169
        %v1171 = vpop.xlane.xlu0 %1170
        %v1172 = vsel %vm1168, %v1167, -inf
        %1173 = vmax.xlane.f32.xlu0 %v1172
        %v1174 = vpop.xlane.xlu0 %1173
        %v1175 = vsub.f32 %v1166, %v1171
        %v1176 = vsub.f32 %v1167, %v1174
        %v1177 = vmul.f32 %v1175, 1.442695
        %v1178 = vpow.pop %v1177
        %v1179 = vmul.f32 %v1176, 1.442695
        %v1180 = vpow.pop %v1179
        %v1181 = vsel %vm1168, %v1178, 0.0
        %1182 = vadd.xlane.f32.xlu0 %v1181
        %v1183 = vpop.xlane.xlu0 %1182
        %v1184 = vsel %vm1168, %v1180, 0.0
        %1185 = vadd.xlane.f32.xlu0 %v1184
        %v1186 = vpop.xlane.xlu0 %1185
        %v1187 = vrcp.pop %v1183
        %v1188 = vmul.f32 %v1178, %v1187
        %v1189 = vrcp.pop %v1186
        %v1190 = vmul.f32 %v1180, %v1189
        %v1191 = vsel %vm1067, %v1055, 0.0
        %v1192 = vsel %vm1067, %v1058, 0.0
        %v1193 = vpack.c.bf16 %v1191, %v1191
        %v1194 = vpack.c.bf16 %v1192, %v1192
        %v1195 = vpack.c.bf16 %v1188, %v1188
        %v1196 = vpack.c.bf16 %v1190, %v1190
        %vm1197 = vcmp.ge.s32.totalorder %v797, 16
        %vm1198 = vmand %vm1197, %vm798
        %v1199 = vsel %vm1198, 1, 0
        %vm1200 = vcmp.eq.s32.totalorder %v1199, 1
        %v1201 = vsel %vm1200, %v1012, 0.0
        %v1202 = vsel %vm1200, %v1016, 0.0
        %v1203 = vpack.c.bf16 %v1201, %v1201
        %v1204 = vpack.c.bf16 %v1202, %v1202
        %1205 = vmatprep.subr.bf16.mxu0 0
        %1206 = vmatpush1.bf16.xpose.msra.mxu0 0
        %1207 = vmatprep.subr.bf16.mxu0 0
        %1208 = vmatpush1.bf16.xpose.msra.mxu0 0
        %1209 = vmatprep.subr.bf16.mxu0 0
        %1210 = vmatpush1.bf16.xpose.msra.mxu0 0
        %1211 = vmatprep.subr.bf16.mxu0 0
        %1212 = vmatpush1.bf16.xpose.msra.mxu0 0
        %1213 = vmatprep.subr.bf16.mxu0 0
        %1214 = vmatpush1.bf16.xpose.msra.mxu0 0
        %1215 = vmatprep.subr.bf16.mxu0 0
        %1216 = vmatpush1.bf16.xpose.msra.mxu0 0
        %1217 = vmatprep.subr.bf16.mxu0 0
        %1218 = vmatpush1.bf16.xpose.msra.mxu0 0
        %1219 = vmatprep.subr.bf16.mxu0 0
        %1220 = vmatpush1.bf16.xpose.msra.mxu0 %v1061
        %1221 = vmatprep.subr.bf16.mxu0 0
        %1222 = vmatpush2.bf16.xpose.msra.mxu0 0
        %1223 = vmatprep.subr.bf16.mxu0 0
        %1224 = vmatpush2.bf16.xpose.msra.mxu0 0
        %1225 = vmatprep.subr.bf16.mxu0 0
        %1226 = vmatpush2.bf16.xpose.msra.mxu0 0
        %1227 = vmatprep.subr.bf16.mxu0 0
        %1228 = vmatpush2.bf16.xpose.msra.mxu0 0
        %1229 = vmatprep.subr.bf16.mxu0 0
        %1230 = vmatpush2.bf16.xpose.msra.mxu0 0
        %1231 = vmatprep.subr.bf16.mxu0 0
        %1232 = vmatpush2.bf16.xpose.msra.mxu0 0
        %1233 = vmatprep.subr.bf16.mxu0 0
        %1234 = vmatpush2.bf16.xpose.msra.mxu0 0
        %1235 = vmatprep.subr.bf16.mxu0 0
        %1236 = vmatpush2.bf16.xpose.msra.mxu0 0
        %1237 = vmatprep.mubr.bf16.mxu0 0
        %1238 = vmatmul.mubr.bf16.gmra.mxu0 %v1203
        %v1239 = vpop.f32.mrf.mxu0
        %v1240 = vadd.f32 0.0, %v1239
        %v1241 = vpop.f32.mrf.mxu0
        %v1242 = vpop.f32.mrf.mxu0
        %v1243 = vpop.f32.mrf.mxu0
        %1244 = vdwg.mxu0
        %1245 = vmatprep.subr.bf16.mxu0 0
        %1246 = vmatpush1.bf16.xpose.msra.mxu0 0
        %1247 = vmatprep.subr.bf16.mxu0 0
        %1248 = vmatpush1.bf16.xpose.msra.mxu0 0
        %1249 = vmatprep.subr.bf16.mxu0 0
        %1250 = vmatpush1.bf16.xpose.msra.mxu0 0
        %1251 = vmatprep.subr.bf16.mxu0 0
        %1252 = vmatpush1.bf16.xpose.msra.mxu0 0
        %1253 = vmatprep.subr.bf16.mxu0 0
        %1254 = vmatpush1.bf16.xpose.msra.mxu0 0
        %1255 = vmatprep.subr.bf16.mxu0 0
        %1256 = vmatpush1.bf16.xpose.msra.mxu0 0
        %1257 = vmatprep.subr.bf16.mxu0 0
        %1258 = vmatpush1.bf16.xpose.msra.mxu0 0
        %1259 = vmatprep.subr.bf16.mxu0 0
        %1260 = vmatpush1.bf16.xpose.msra.mxu0 %v1062
        %1261 = vmatprep.subr.bf16.mxu0 0
        %1262 = vmatpush2.bf16.xpose.msra.mxu0 0
        %1263 = vmatprep.subr.bf16.mxu0 0
        %1264 = vmatpush2.bf16.xpose.msra.mxu0 0
        %1265 = vmatprep.subr.bf16.mxu0 0
        %1266 = vmatpush2.bf16.xpose.msra.mxu0 0
        %1267 = vmatprep.subr.bf16.mxu0 0
        %1268 = vmatpush2.bf16.xpose.msra.mxu0 0
        %1269 = vmatprep.subr.bf16.mxu0 0
        %1270 = vmatpush2.bf16.xpose.msra.mxu0 0
        %1271 = vmatprep.subr.bf16.mxu0 0
        %1272 = vmatpush2.bf16.xpose.msra.mxu0 0
        %1273 = vmatprep.subr.bf16.mxu0 0
        %1274 = vmatpush2.bf16.xpose.msra.mxu0 0
        %1275 = vmatprep.subr.bf16.mxu0 0
        %1276 = vmatpush2.bf16.xpose.msra.mxu0 0
        %1277 = vmatprep.mubr.bf16.mxu0 0
        %1278 = vmatmul.mubr.bf16.gmra.mxu0 %v1204
        %v1279 = vpop.f32.mrf.mxu0
        %v1280 = vadd.f32 0.0, %v1279
        %v1281 = vpop.f32.mrf.mxu0
        %v1282 = vpop.f32.mrf.mxu0
        %v1283 = vpop.f32.mrf.mxu0
        %1284 = vdwg.mxu0
        %v1285 = vmul.f32 %v1240, 0.25
        %v1286 = vmul.f32 %v1280, 0.25
        %v1287 = vsel %vm1164, %v1285, -1e+09
        %v1288 = vsel %vm1165, %v1286, -1e+09
        %v1289 = vsel %vm1168, %v1287, -inf
        %1290 = vmax.xlane.f32.xlu0 %v1289
        %v1291 = vpop.xlane.xlu0 %1290
        %v1292 = vsel %vm1168, %v1288, -inf
        %1293 = vmax.xlane.f32.xlu0 %v1292
        %v1294 = vpop.xlane.xlu0 %1293
        %v1295 = vsub.f32 %v1287, %v1291
        %v1296 = vsub.f32 %v1288, %v1294
        %v1297 = vmul.f32 %v1295, 1.442695
        %v1298 = vpow.pop %v1297
        %v1299 = vmul.f32 %v1296, 1.442695
        %v1300 = vpow.pop %v1299
        %v1301 = vsel %vm1168, %v1298, 0.0
        %1302 = vadd.xlane.f32.xlu0 %v1301
        %v1303 = vpop.xlane.xlu0 %1302
        %v1304 = vsel %vm1168, %v1300, 0.0
        %1305 = vadd.xlane.f32.xlu0 %v1304
        %v1306 = vpop.xlane.xlu0 %1305
        %v1307 = vrcp.pop %v1303
        %v1308 = vmul.f32 %v1298, %v1307
        %v1309 = vrcp.pop %v1306
        %v1310 = vmul.f32 %v1300, %v1309
        %v1311 = vsel %vm1200, %v1055, 0.0
        %v1312 = vsel %vm1200, %v1058, 0.0
        %v1313 = vpack.c.bf16 %v1311, %v1311
        %v1314 = vpack.c.bf16 %v1312, %v1312
        %v1315 = vpack.c.bf16 %v1308, %v1308
        %v1316 = vpack.c.bf16 %v1310, %v1310
        %v1318 = vsel %vm1168, %v1315, 0
        %vm1320 = vcmask 1043456
        %v1322 = vsel %vm1320, %v1313, 0
        %1324 = vmatprep.subr.bf16.mxu0 0
        %1325 = vmatpush1.bf16.msra.mxu0 0
        %1326 = vmatprep.subr.bf16.mxu0 0
        %1327 = vmatpush1.bf16.msra.mxu0 0
        %1328 = vmatprep.subr.bf16.mxu0 0
        %1329 = vmatpush1.bf16.msra.mxu0 0
        %1330 = vmatprep.subr.bf16.mxu0 0
        %1331 = vmatpush1.bf16.msra.mxu0 0
        %1332 = vmatprep.subr.bf16.mxu0 0
        %1333 = vmatpush1.bf16.msra.mxu0 0
        %1334 = vmatprep.subr.bf16.mxu0 0
        %1335 = vmatpush1.bf16.msra.mxu0 0
        %1336 = vmatprep.subr.bf16.mxu0 0
        %1337 = vmatpush1.bf16.msra.mxu0 0
        %1338 = vmatprep.subr.bf16.mxu0 0
        %1339 = vmatpush1.bf16.msra.mxu0 %v1322
        %1340 = vmatprep.subr.bf16.mxu0 0
        %1341 = vmatpush2.bf16.msra.mxu0 0
        %1342 = vmatprep.subr.bf16.mxu0 0
        %1343 = vmatpush2.bf16.msra.mxu0 0
        %1344 = vmatprep.subr.bf16.mxu0 0
        %1345 = vmatpush2.bf16.msra.mxu0 0
        %1346 = vmatprep.subr.bf16.mxu0 0
        %1347 = vmatpush2.bf16.msra.mxu0 0
        %1348 = vmatprep.subr.bf16.mxu0 0
        %1349 = vmatpush2.bf16.msra.mxu0 0
        %1350 = vmatprep.subr.bf16.mxu0 0
        %1351 = vmatpush2.bf16.msra.mxu0 0
        %1352 = vmatprep.subr.bf16.mxu0 0
        %1353 = vmatpush2.bf16.msra.mxu0 0
        %1354 = vmatprep.subr.bf16.mxu0 0
        %1355 = vmatpush2.bf16.msra.mxu0 0
        %1356 = vmatprep.mubr.bf16.mxu0 0
        %1357 = vmatmul.mubr.bf16.gmra.mxu0 %v1318
        %v1358 = vpop.f32.mrf.mxu0
        %v1359 = vadd.f32 0.0, %v1358
        %v1360 = vpop.f32.mrf.mxu0
        %v1361 = vpop.f32.mrf.mxu0
        %v1362 = vpop.f32.mrf.mxu0
        %1363 = vdwg.mxu0
        %v1365 = vsel %vm1168, %v1316, 0
        %v1368 = vsel %vm1320, %v1314, 0
        %1370 = vmatprep.subr.bf16.mxu0 0
        %1371 = vmatpush1.bf16.msra.mxu0 0
        %1372 = vmatprep.subr.bf16.mxu0 0
        %1373 = vmatpush1.bf16.msra.mxu0 0
        %1374 = vmatprep.subr.bf16.mxu0 0
        %1375 = vmatpush1.bf16.msra.mxu0 0
        %1376 = vmatprep.subr.bf16.mxu0 0
        %1377 = vmatpush1.bf16.msra.mxu0 0
        %1378 = vmatprep.subr.bf16.mxu0 0
        %1379 = vmatpush1.bf16.msra.mxu0 0
        %1380 = vmatprep.subr.bf16.mxu0 0
        %1381 = vmatpush1.bf16.msra.mxu0 0
        %1382 = vmatprep.subr.bf16.mxu0 0
        %1383 = vmatpush1.bf16.msra.mxu0 0
        %1384 = vmatprep.subr.bf16.mxu0 0
        %1385 = vmatpush1.bf16.msra.mxu0 %v1368
        %1386 = vmatprep.subr.bf16.mxu0 0
        %1387 = vmatpush2.bf16.msra.mxu0 0
        %1388 = vmatprep.subr.bf16.mxu0 0
        %1389 = vmatpush2.bf16.msra.mxu0 0
        %1390 = vmatprep.subr.bf16.mxu0 0
        %1391 = vmatpush2.bf16.msra.mxu0 0
        %1392 = vmatprep.subr.bf16.mxu0 0
        %1393 = vmatpush2.bf16.msra.mxu0 0
        %1394 = vmatprep.subr.bf16.mxu0 0
        %1395 = vmatpush2.bf16.msra.mxu0 0
        %1396 = vmatprep.subr.bf16.mxu0 0
        %1397 = vmatpush2.bf16.msra.mxu0 0
        %1398 = vmatprep.subr.bf16.mxu0 0
        %1399 = vmatpush2.bf16.msra.mxu0 0
        %1400 = vmatprep.subr.bf16.mxu0 0
        %1401 = vmatpush2.bf16.msra.mxu0 0
        %1402 = vmatprep.mubr.bf16.mxu0 0
        %1403 = vmatmul.mubr.bf16.gmra.mxu0 %v1365
        %v1404 = vpop.f32.mrf.mxu0
        %v1405 = vadd.f32 0.0, %v1404
        %v1406 = vpop.f32.mrf.mxu0
        %v1407 = vpop.f32.mrf.mxu0
        %v1408 = vpop.f32.mrf.mxu0
        %1409 = vdwg.mxu0
        %v1411 = vsel %vm1168, %v1195, 0
        %v1414 = vsel %vm1320, %v1193, 0
        %1416 = vmatprep.subr.bf16.mxu0 0
        %1417 = vmatpush1.bf16.msra.mxu0 0
        %1418 = vmatprep.subr.bf16.mxu0 0
        %1419 = vmatpush1.bf16.msra.mxu0 0
        %1420 = vmatprep.subr.bf16.mxu0 0
        %1421 = vmatpush1.bf16.msra.mxu0 0
        %1422 = vmatprep.subr.bf16.mxu0 0
        %1423 = vmatpush1.bf16.msra.mxu0 0
        %1424 = vmatprep.subr.bf16.mxu0 0
        %1425 = vmatpush1.bf16.msra.mxu0 0
        %1426 = vmatprep.subr.bf16.mxu0 0
        %1427 = vmatpush1.bf16.msra.mxu0 0
        %1428 = vmatprep.subr.bf16.mxu0 0
        %1429 = vmatpush1.bf16.msra.mxu0 0
        %1430 = vmatprep.subr.bf16.mxu0 0
        %1431 = vmatpush1.bf16.msra.mxu0 %v1414
        %1432 = vmatprep.subr.bf16.mxu0 0
        %1433 = vmatpush2.bf16.msra.mxu0 0
        %1434 = vmatprep.subr.bf16.mxu0 0
        %1435 = vmatpush2.bf16.msra.mxu0 0
        %1436 = vmatprep.subr.bf16.mxu0 0
        %1437 = vmatpush2.bf16.msra.mxu0 0
        %1438 = vmatprep.subr.bf16.mxu0 0
        %1439 = vmatpush2.bf16.msra.mxu0 0
        %1440 = vmatprep.subr.bf16.mxu0 0
        %1441 = vmatpush2.bf16.msra.mxu0 0
        %1442 = vmatprep.subr.bf16.mxu0 0
        %1443 = vmatpush2.bf16.msra.mxu0 0
        %1444 = vmatprep.subr.bf16.mxu0 0
        %1445 = vmatpush2.bf16.msra.mxu0 0
        %1446 = vmatprep.subr.bf16.mxu0 0
        %1447 = vmatpush2.bf16.msra.mxu0 0
        %1448 = vmatprep.mubr.bf16.mxu0 0
        %1449 = vmatmul.mubr.bf16.gmra.mxu0 %v1411
        %v1450 = vpop.f32.mrf.mxu0
        %v1451 = vadd.f32 %v1359, %v1450
        %v1452 = vpop.f32.mrf.mxu0
        %v1453 = vpop.f32.mrf.mxu0
        %v1454 = vpop.f32.mrf.mxu0
        %1455 = vdwg.mxu0
        %v1457 = vsel %vm1168, %v1196, 0
        %v1460 = vsel %vm1320, %v1194, 0
        %1462 = vmatprep.subr.bf16.mxu0 0
        %1463 = vmatpush1.bf16.msra.mxu0 0
        %1464 = vmatprep.subr.bf16.mxu0 0
        %1465 = vmatpush1.bf16.msra.mxu0 0
        %1466 = vmatprep.subr.bf16.mxu0 0
        %1467 = vmatpush1.bf16.msra.mxu0 0
        %1468 = vmatprep.subr.bf16.mxu0 0
        %1469 = vmatpush1.bf16.msra.mxu0 0
        %1470 = vmatprep.subr.bf16.mxu0 0
        %1471 = vmatpush1.bf16.msra.mxu0 0
        %1472 = vmatprep.subr.bf16.mxu0 0
        %1473 = vmatpush1.bf16.msra.mxu0 0
        %1474 = vmatprep.subr.bf16.mxu0 0
        %1475 = vmatpush1.bf16.msra.mxu0 0
        %1476 = vmatprep.subr.bf16.mxu0 0
        %1477 = vmatpush1.bf16.msra.mxu0 %v1460
        %1478 = vmatprep.subr.bf16.mxu0 0
        %1479 = vmatpush2.bf16.msra.mxu0 0
        %1480 = vmatprep.subr.bf16.mxu0 0
        %1481 = vmatpush2.bf16.msra.mxu0 0
        %1482 = vmatprep.subr.bf16.mxu0 0
        %1483 = vmatpush2.bf16.msra.mxu0 0
        %1484 = vmatprep.subr.bf16.mxu0 0
        %1485 = vmatpush2.bf16.msra.mxu0 0
        %1486 = vmatprep.subr.bf16.mxu0 0
        %1487 = vmatpush2.bf16.msra.mxu0 0
        %1488 = vmatprep.subr.bf16.mxu0 0
        %1489 = vmatpush2.bf16.msra.mxu0 0
        %1490 = vmatprep.subr.bf16.mxu0 0
        %1491 = vmatpush2.bf16.msra.mxu0 0
        %1492 = vmatprep.subr.bf16.mxu0 0
        %1493 = vmatpush2.bf16.msra.mxu0 0
        %1494 = vmatprep.mubr.bf16.mxu0 0
        %1495 = vmatmul.mubr.bf16.gmra.mxu0 %v1457
        %v1496 = vpop.f32.mrf.mxu0
        %v1497 = vadd.f32 %v1405, %v1496
        %v1498 = vpop.f32.mrf.mxu0
        %v1499 = vpop.f32.mrf.mxu0
        %v1500 = vpop.f32.mrf.mxu0
        %1501 = vdwg.mxu0
        %v1502 = vpack.c.bf16 %v1497, %v1451
        %v1503 = vld [vmem:[%s658] sm:$0xf]
        %v1504 = vld [vmem:[%s658 + $0x4] sm:$0xf]
        %v1505 = vld [vmem:[%s658 + $0x8] sm:$0xf]
        %v1506 = vld [vmem:[%s658 + $0xc] sm:$0xf]
        %v1507 = vld [vmem:[%s658 + $0x10] sm:$0xf]
        %v1508 = vld [vmem:[%s658 + $0x14] sm:$0xf]
        %v1509 = vld [vmem:[%s658 + $0x18] sm:$0xf]
        %v1510 = vld [vmem:[%s658 + $0x1c] sm:$0xf]
        %v1511 = vld [vmem:[%s658 + $0x20] sm:$0xf]
        %v1512 = vld [vmem:[%s658 + $0x24] sm:$0xf]
        %v1513 = vld [vmem:[%s658 + $0x28] sm:$0xf]
        %v1514 = vld [vmem:[%s658 + $0x2c] sm:$0xf]
        %v1515 = vld [vmem:[%s658 + $0x30] sm:$0xf]
        %v1516 = vld [vmem:[%s658 + $0x34] sm:$0xf]
        %v1517 = vld [vmem:[%s658 + $0x38] sm:$0xf]
        %v1518 = vld [vmem:[%s658 + $0x3c] sm:$0xf]
        %v1519 = vld [vmem:[%s761] sm:$0x1]
        %v1521 = vlaneseq
        %v1522 = vshrl.u32 %v1521, 7
        %v1523 = vsub.s32 0, %v1522
        %v1524 = vrot.slane %v1519, %v1523
        %v1542 = vunpack.c.l.b16 %v1503
        %v1543 = vunpack.c.l.b16 %v1504
        %v1544 = vunpack.c.l.b16 %v1505
        %v1545 = vunpack.c.l.b16 %v1506
        %v1546 = vunpack.c.l.b16 %v1507
        %v1547 = vunpack.c.l.b16 %v1508
        %v1548 = vunpack.c.l.b16 %v1509
        %v1549 = vunpack.c.l.b16 %v1510
        %v1550 = vunpack.c.l.b16 %v1511
        %v1551 = vunpack.c.l.b16 %v1512
        %v1552 = vunpack.c.l.b16 %v1513
        %v1553 = vunpack.c.l.b16 %v1514
        %v1554 = vunpack.c.l.b16 %v1515
        %v1555 = vunpack.c.l.b16 %v1516
        %v1556 = vunpack.c.l.b16 %v1517
        %v1557 = vunpack.c.l.b16 %v1518
        %v1558 = vpack.c.b16 %v1543, %v1542
        %v1559 = vpack.c.b16 %v1545, %v1544
        %v1560 = vpack.c.b16 %v1547, %v1546
        %v1561 = vpack.c.b16 %v1549, %v1548
        %v1562 = vpack.c.b16 %v1551, %v1550
        %v1563 = vpack.c.b16 %v1553, %v1552
        %v1564 = vpack.c.b16 %v1555, %v1554
        %v1565 = vpack.c.b16 %v1557, %v1556
        %1574 = vmatprep.subr.bf16.mxu0 0
        %1575 = vmatpush1.bf16.msra.mxu0 %v1565
        %1576 = vmatprep.subr.bf16.mxu0 0
        %1577 = vmatpush1.bf16.msra.mxu0 %v1564
        %1578 = vmatprep.subr.bf16.mxu0 0
        %1579 = vmatpush1.bf16.msra.mxu0 %v1563
        %1580 = vmatprep.subr.bf16.mxu0 0
        %1581 = vmatpush1.bf16.msra.mxu0 %v1562
        %1582 = vmatprep.subr.bf16.mxu0 0
        %1583 = vmatpush1.bf16.msra.mxu0 %v1561
        %1584 = vmatprep.subr.bf16.mxu0 0
        %1585 = vmatpush1.bf16.msra.mxu0 %v1560
        %1586 = vmatprep.subr.bf16.mxu0 0
        %1587 = vmatpush1.bf16.msra.mxu0 %v1559
        %1588 = vmatprep.subr.bf16.mxu0 0
        %1589 = vmatpush1.bf16.msra.mxu0 %v1558
        %1590 = vmatprep.subr.bf16.mxu0 0
        %1591 = vmatpush2.bf16.msra.mxu0 0
        %1592 = vmatprep.subr.bf16.mxu0 0
        %1593 = vmatpush2.bf16.msra.mxu0 0
        %1594 = vmatprep.subr.bf16.mxu0 0
        %1595 = vmatpush2.bf16.msra.mxu0 0
        %1596 = vmatprep.subr.bf16.mxu0 0
        %1597 = vmatpush2.bf16.msra.mxu0 0
        %1598 = vmatprep.subr.bf16.mxu0 0
        %1599 = vmatpush2.bf16.msra.mxu0 0
        %1600 = vmatprep.subr.bf16.mxu0 0
        %1601 = vmatpush2.bf16.msra.mxu0 0
        %1602 = vmatprep.subr.bf16.mxu0 0
        %1603 = vmatpush2.bf16.msra.mxu0 0
        %1604 = vmatprep.subr.bf16.mxu0 0
        %1605 = vmatpush2.bf16.msra.mxu0 0
        %1606 = vmatprep.mubr.bf16.mxu0 0
        %1607 = vmatmul.mubr.bf16.gmra.mxu0 %v1502
        %v1608 = vpop.f32.mrf.mxu0
        %v1609 = vadd.f32 %v1524, %v1608
        %v1610 = vpop.f32.mrf.mxu0
        %v1611 = vpop.f32.mrf.mxu0
        %v1612 = vadd.f32 %v1524, %v1611
        %v1613 = vpop.f32.mrf.mxu0
        %1614 = vdwg.mxu0
        %v1615 = vadd.f32 %v790, %v1609
        %v1616 = vadd.f32 %v791, %v1612
        %v1617 = vld [vmem:[%s764] sm:$0x1]
        %v1618 = vld [vmem:[%s767] sm:$0x1]
        %1619 = vadd.xlane.f32.xlu0 %v1615
        %v1620 = vpop.xlane.xlu0 %1619
        %1621 = vadd.xlane.f32.xlu0 %v1616
        %v1622 = vpop.xlane.xlu0 %1621
        %v1623 = vmul.f32 %v1620, 0.03125
        %v1624 = vmul.f32 %v1622, 0.03125
        %v1625 = vsub.f32 %v1615, %v1623
        %v1626 = vsub.f32 %v1616, %v1624
        %v1627 = vsel %vm798, 1, 0
        %vm1628 = vcmp.eq.s32.totalorder %v1627, 1
        %v1629 = vsel %vm1628, %v1625, 0.0
        %v1630 = vsel %vm1628, %v1626, 0.0
        %v1631 = vmul.f32 %v1629, %v1629
        %v1632 = vmul.f32 %v1630, %v1630
        %1633 = vadd.xlane.f32.xlu0 %v1631
        %v1634 = vpop.xlane.xlu0 %1633
        %1635 = vadd.xlane.f32.xlu0 %v1632
        %v1636 = vpop.xlane.xlu0 %1635
        %v1637 = vmul.f32 %v1634, 0.032258064
        %v1638 = vmul.f32 %v1636, 0.032258064
        %v1639 = vrsqrt.pop %v1637
        %v1640 = vmul.f32 %v1637, %v1639
        %vm1641 = vcmp.eq.f32.partialorder %v1637, inf
        %v1642 = vsel %vm1641, %v1637, %v1640
        %vm1643 = vcmp.eq.f32.partialorder %v1637, 0.0
        %v1644 = vand.u32 %v1637, 2147483648
        %v1645 = vsel %vm1643, %v1644, %v1642
        %v1646 = vrsqrt.pop %v1638
        %v1647 = vmul.f32 %v1638, %v1646
        %vm1648 = vcmp.eq.f32.partialorder %v1638, inf
        %v1649 = vsel %vm1648, %v1638, %v1647
        %vm1650 = vcmp.eq.f32.partialorder %v1638, 0.0
        %v1651 = vand.u32 %v1638, 2147483648
        %v1652 = vsel %vm1650, %v1651, %v1649
        %v1653 = vadd.f32 %v1645, 1e-06
        %v1654 = vadd.f32 %v1652, 1e-06
        %v1655 = vrcp.pop %v1653
        %v1656 = vmul.f32 %v1629, %v1655
        %v1657 = vrcp.pop %v1654
        %v1658 = vmul.f32 %v1630, %v1657
        %v1660 = vlaneseq
        %v1661 = vshrl.u32 %v1660, 7
        %v1662 = vsub.s32 0, %v1661
        %v1663 = vrot.slane %v1617, %v1662
        %v1665 = vmul.f32 %v1663, %v1656
        %v1666 = vmul.f32 %v1663, %v1658
        %v1668 = vlaneseq
        %v1669 = vshrl.u32 %v1668, 7
        %v1670 = vsub.s32 0, %v1669
        %v1671 = vrot.slane %v1618, %v1670
        %v1673 = vadd.f32 %v1665, %v1671
        %v1674 = vadd.f32 %v1666, %v1671
        %v1675 = vpack.c.bf16 %v1674, %v1673
        %v1676 = vld [vmem:[%s667] sm:$0xf]
        %v1677 = vld [vmem:[%s667 + $0x4] sm:$0xf]
        %v1678 = vld [vmem:[%s667 + $0x8] sm:$0xf]
        %v1679 = vld [vmem:[%s667 + $0xc] sm:$0xf]
        %v1680 = vld [vmem:[%s667 + $0x10] sm:$0xf]
        %v1681 = vld [vmem:[%s667 + $0x14] sm:$0xf]
        %v1682 = vld [vmem:[%s667 + $0x18] sm:$0xf]
        %v1683 = vld [vmem:[%s667 + $0x1c] sm:$0xf]
        %v1684 = vld [vmem:[%s667 + $0x20] sm:$0xf]
        %v1685 = vld [vmem:[%s667 + $0x24] sm:$0xf]
        %v1686 = vld [vmem:[%s667 + $0x28] sm:$0xf]
        %v1687 = vld [vmem:[%s667 + $0x2c] sm:$0xf]
        %v1688 = vld [vmem:[%s667 + $0x30] sm:$0xf]
        %v1689 = vld [vmem:[%s667 + $0x34] sm:$0xf]
        %v1690 = vld [vmem:[%s667 + $0x38] sm:$0xf]
        %v1691 = vld [vmem:[%s667 + $0x3c] sm:$0xf]
        %v1692 = vld [vmem:[%s770] sm:$0x1]
        %v1694 = vlaneseq
        %v1695 = vshrl.u32 %v1694, 7
        %v1696 = vsub.s32 0, %v1695
        %v1697 = vrot.slane %v1692, %v1696
        %v1715 = vunpack.c.l.b16 %v1676
        %v1716 = vunpack.c.l.b16 %v1677
        %v1717 = vunpack.c.l.b16 %v1678
        %v1718 = vunpack.c.l.b16 %v1679
        %v1719 = vunpack.c.l.b16 %v1680
        %v1720 = vunpack.c.l.b16 %v1681
        %v1721 = vunpack.c.l.b16 %v1682
        %v1722 = vunpack.c.l.b16 %v1683
        %v1723 = vunpack.c.l.b16 %v1684
        %v1724 = vunpack.c.l.b16 %v1685
        %v1725 = vunpack.c.l.b16 %v1686
        %v1726 = vunpack.c.l.b16 %v1687
        %v1727 = vunpack.c.l.b16 %v1688
        %v1728 = vunpack.c.l.b16 %v1689
        %v1729 = vunpack.c.l.b16 %v1690
        %v1730 = vunpack.c.l.b16 %v1691
        %v1731 = vpack.c.b16 %v1716, %v1715
        %v1732 = vpack.c.b16 %v1718, %v1717
        %v1733 = vpack.c.b16 %v1720, %v1719
        %v1734 = vpack.c.b16 %v1722, %v1721
        %v1735 = vpack.c.b16 %v1724, %v1723
        %v1736 = vpack.c.b16 %v1726, %v1725
        %v1737 = vpack.c.b16 %v1728, %v1727
        %v1738 = vpack.c.b16 %v1730, %v1729
        %1747 = vmatprep.subr.bf16.mxu0 0
        %1748 = vmatpush1.bf16.msra.mxu0 %v1738
        %1749 = vmatprep.subr.bf16.mxu0 0
        %1750 = vmatpush1.bf16.msra.mxu0 %v1737
        %1751 = vmatprep.subr.bf16.mxu0 0
        %1752 = vmatpush1.bf16.msra.mxu0 %v1736
        %1753 = vmatprep.subr.bf16.mxu0 0
        %1754 = vmatpush1.bf16.msra.mxu0 %v1735
        %1755 = vmatprep.subr.bf16.mxu0 0
        %1756 = vmatpush1.bf16.msra.mxu0 %v1734
        %1757 = vmatprep.subr.bf16.mxu0 0
        %1758 = vmatpush1.bf16.msra.mxu0 %v1733
        %1759 = vmatprep.subr.bf16.mxu0 0
        %1760 = vmatpush1.bf16.msra.mxu0 %v1732
        %1761 = vmatprep.subr.bf16.mxu0 0
        %1762 = vmatpush1.bf16.msra.mxu0 %v1731
        %1763 = vmatprep.subr.bf16.mxu0 0
        %1764 = vmatpush2.bf16.msra.mxu0 0
        %1765 = vmatprep.subr.bf16.mxu0 0
        %1766 = vmatpush2.bf16.msra.mxu0 0
        %1767 = vmatprep.subr.bf16.mxu0 0
        %1768 = vmatpush2.bf16.msra.mxu0 0
        %1769 = vmatprep.subr.bf16.mxu0 0
        %1770 = vmatpush2.bf16.msra.mxu0 0
        %1771 = vmatprep.subr.bf16.mxu0 0
        %1772 = vmatpush2.bf16.msra.mxu0 0
        %1773 = vmatprep.subr.bf16.mxu0 0
        %1774 = vmatpush2.bf16.msra.mxu0 0
        %1775 = vmatprep.subr.bf16.mxu0 0
        %1776 = vmatpush2.bf16.msra.mxu0 0
        %1777 = vmatprep.subr.bf16.mxu0 0
        %1778 = vmatpush2.bf16.msra.mxu0 0
        %1779 = vmatprep.mubr.bf16.mxu0 0
        %1780 = vmatmul.mubr.bf16.gmra.mxu0 %v1675
        %v1781 = vpop.f32.mrf.mxu0
        %v1782 = vadd.f32 %v1697, %v1781
        %v1783 = vpop.f32.mrf.mxu0
        %v1784 = vpop.f32.mrf.mxu0
        %v1785 = vadd.f32 %v1697, %v1784
        %v1786 = vpop.f32.mrf.mxu0
        %1787 = vdwg.mxu0
        %v1788 = vmul.f32 %v1782, 0.5
        %v1789 = vmul.f32 %v1785, 0.5
        %v1790 = vmul.f32 %v1782, 0.044715
        %v1791 = vmul.f32 %v1785, 0.044715
        %v1792 = vmul.f32 %v1790, %v1782
        %v1793 = vmul.f32 %v1791, %v1785
        %v1794 = vmul.f32 %v1792, %v1782
        %v1795 = vmul.f32 %v1793, %v1785
        %v1796 = vadd.f32 %v1782, %v1794
        %v1797 = vadd.f32 %v1785, %v1795
        %v1798 = vmul.f32 %v1796, 0.7978846
        %v1799 = vmul.f32 %v1797, 0.7978846
        %v1800 = vtanh.pop %v1798
        %v1801 = vtanh.pop %v1799
        %v1802 = vadd.f32 %v1800, 1.0
        %v1803 = vadd.f32 %v1801, 1.0
        %v1804 = vmul.f32 %v1788, %v1802
        %v1805 = vmul.f32 %v1789, %v1803
        %v1806 = vpack.c.bf16 %v1805, %v1804
        %v1807 = vld [vmem:[%s676] sm:$0xf]
        %v1808 = vld [vmem:[%s676 + $0x4] sm:$0xf]
        %v1809 = vld [vmem:[%s676 + $0x8] sm:$0xf]
        %v1810 = vld [vmem:[%s676 + $0xc] sm:$0xf]
        %v1811 = vld [vmem:[%s676 + $0x10] sm:$0xf]
        %v1812 = vld [vmem:[%s676 + $0x14] sm:$0xf]
        %v1813 = vld [vmem:[%s676 + $0x18] sm:$0xf]
        %v1814 = vld [vmem:[%s676 + $0x1c] sm:$0xf]
        %v1815 = vld [vmem:[%s676 + $0x20] sm:$0xf]
        %v1816 = vld [vmem:[%s676 + $0x24] sm:$0xf]
        %v1817 = vld [vmem:[%s676 + $0x28] sm:$0xf]
        %v1818 = vld [vmem:[%s676 + $0x2c] sm:$0xf]
        %v1819 = vld [vmem:[%s676 + $0x30] sm:$0xf]
        %v1820 = vld [vmem:[%s676 + $0x34] sm:$0xf]
        %v1821 = vld [vmem:[%s676 + $0x38] sm:$0xf]
        %v1822 = vld [vmem:[%s676 + $0x3c] sm:$0xf]
        %v1823 = vld [vmem:[%s773] sm:$0x1]
        %v1825 = vlaneseq
        %v1826 = vshrl.u32 %v1825, 7
        %v1827 = vsub.s32 0, %v1826
        %v1828 = vrot.slane %v1823, %v1827
        %v1846 = vunpack.c.l.b16 %v1807
        %v1847 = vunpack.c.l.b16 %v1808
        %v1848 = vunpack.c.l.b16 %v1809
        %v1849 = vunpack.c.l.b16 %v1810
        %v1850 = vunpack.c.l.b16 %v1811
        %v1851 = vunpack.c.l.b16 %v1812
        %v1852 = vunpack.c.l.b16 %v1813
        %v1853 = vunpack.c.l.b16 %v1814
        %v1854 = vunpack.c.l.b16 %v1815
        %v1855 = vunpack.c.l.b16 %v1816
        %v1856 = vunpack.c.l.b16 %v1817
        %v1857 = vunpack.c.l.b16 %v1818
        %v1858 = vunpack.c.l.b16 %v1819
        %v1859 = vunpack.c.l.b16 %v1820
        %v1860 = vunpack.c.l.b16 %v1821
        %v1861 = vunpack.c.l.b16 %v1822
        %v1862 = vpack.c.b16 %v1847, %v1846
        %v1863 = vpack.c.b16 %v1849, %v1848
        %v1864 = vpack.c.b16 %v1851, %v1850
        %v1865 = vpack.c.b16 %v1853, %v1852
        %v1866 = vpack.c.b16 %v1855, %v1854
        %v1867 = vpack.c.b16 %v1857, %v1856
        %v1868 = vpack.c.b16 %v1859, %v1858
        %v1869 = vpack.c.b16 %v1861, %v1860
        %1878 = vmatprep.subr.bf16.mxu0 0
        %1879 = vmatpush1.bf16.msra.mxu0 %v1869
        %1880 = vmatprep.subr.bf16.mxu0 0
        %1881 = vmatpush1.bf16.msra.mxu0 %v1868
        %1882 = vmatprep.subr.bf16.mxu0 0
        %1883 = vmatpush1.bf16.msra.mxu0 %v1867
        %1884 = vmatprep.subr.bf16.mxu0 0
        %1885 = vmatpush1.bf16.msra.mxu0 %v1866
        %1886 = vmatprep.subr.bf16.mxu0 0
        %1887 = vmatpush1.bf16.msra.mxu0 %v1865
        %1888 = vmatprep.subr.bf16.mxu0 0
        %1889 = vmatpush1.bf16.msra.mxu0 %v1864
        %1890 = vmatprep.subr.bf16.mxu0 0
        %1891 = vmatpush1.bf16.msra.mxu0 %v1863
        %1892 = vmatprep.subr.bf16.mxu0 0
        %1893 = vmatpush1.bf16.msra.mxu0 %v1862
        %1894 = vmatprep.subr.bf16.mxu0 0
        %1895 = vmatpush2.bf16.msra.mxu0 0
        %1896 = vmatprep.subr.bf16.mxu0 0
        %1897 = vmatpush2.bf16.msra.mxu0 0
        %1898 = vmatprep.subr.bf16.mxu0 0
        %1899 = vmatpush2.bf16.msra.mxu0 0
        %1900 = vmatprep.subr.bf16.mxu0 0
        %1901 = vmatpush2.bf16.msra.mxu0 0
        %1902 = vmatprep.subr.bf16.mxu0 0
        %1903 = vmatpush2.bf16.msra.mxu0 0
        %1904 = vmatprep.subr.bf16.mxu0 0
        %1905 = vmatpush2.bf16.msra.mxu0 0
        %1906 = vmatprep.subr.bf16.mxu0 0
        %1907 = vmatpush2.bf16.msra.mxu0 0
        %1908 = vmatprep.subr.bf16.mxu0 0
        %1909 = vmatpush2.bf16.msra.mxu0 0
        %1910 = vmatprep.mubr.bf16.mxu0 0
        %1911 = vmatmul.mubr.bf16.gmra.mxu0 %v1806
        %v1912 = vpop.f32.mrf.mxu0
        %v1913 = vadd.f32 %v1828, %v1912
        %v1914 = vpop.f32.mrf.mxu0
        %v1915 = vpop.f32.mrf.mxu0
        %v1916 = vadd.f32 %v1828, %v1915
        %v1917 = vpop.f32.mrf.mxu0
        %1918 = vdwg.mxu0
        %v1919 = vadd.f32 %v1673, %v1913
        %v1920 = vadd.f32 %v1674, %v1916
        %v1921 = vld [vmem:[%s776] sm:$0x1]
        %v1922 = vld [vmem:[%s779] sm:$0x1]
        %1923 = vadd.xlane.f32.xlu0 %v1919
        %v1924 = vpop.xlane.xlu0 %1923
        %1925 = vadd.xlane.f32.xlu0 %v1920
        %v1926 = vpop.xlane.xlu0 %1925
        %v1927 = vmul.f32 %v1924, 0.03125
        %v1928 = vmul.f32 %v1926, 0.03125
        %v1929 = vsub.f32 %v1919, %v1927
        %v1930 = vsub.f32 %v1920, %v1928
        %v1931 = vsel %vm1628, %v1929, 0.0
        %v1932 = vsel %vm1628, %v1930, 0.0
        %v1933 = vmul.f32 %v1931, %v1931
        %v1934 = vmul.f32 %v1932, %v1932
        %1935 = vadd.xlane.f32.xlu0 %v1933
        %v1936 = vpop.xlane.xlu0 %1935
        %1937 = vadd.xlane.f32.xlu0 %v1934
        %v1938 = vpop.xlane.xlu0 %1937
        %v1939 = vmul.f32 %v1936, 0.032258064
        %v1940 = vmul.f32 %v1938, 0.032258064
        %v1941 = vrsqrt.pop %v1939
        %v1942 = vmul.f32 %v1939, %v1941
        %vm1943 = vcmp.eq.f32.partialorder %v1939, inf
        %v1944 = vsel %vm1943, %v1939, %v1942
        %vm1945 = vcmp.eq.f32.partialorder %v1939, 0.0
        %v1946 = vand.u32 %v1939, 2147483648
        %v1947 = vsel %vm1945, %v1946, %v1944
        %v1948 = vrsqrt.pop %v1940
        %v1949 = vmul.f32 %v1940, %v1948
        %vm1950 = vcmp.eq.f32.partialorder %v1940, inf
        %v1951 = vsel %vm1950, %v1940, %v1949
        %vm1952 = vcmp.eq.f32.partialorder %v1940, 0.0
        %v1953 = vand.u32 %v1940, 2147483648
        %v1954 = vsel %vm1952, %v1953, %v1951
        %v1955 = vadd.f32 %v1947, 1e-06
        %v1956 = vadd.f32 %v1954, 1e-06
        %v1957 = vrcp.pop %v1955
        %v1958 = vmul.f32 %v1931, %v1957
        %v1959 = vrcp.pop %v1956
        %v1960 = vmul.f32 %v1932, %v1959
        %v1962 = vlaneseq
        %v1963 = vshrl.u32 %v1962, 7
        %v1964 = vsub.s32 0, %v1963
        %v1965 = vrot.slane %v1921, %v1964
        %v1967 = vmul.f32 %v1965, %v1958
        %v1968 = vmul.f32 %v1965, %v1960
        %v1970 = vlaneseq
        %v1971 = vshrl.u32 %v1970, 7
        %v1972 = vsub.s32 0, %v1971
        %v1973 = vrot.slane %v1922, %v1972
        %v1975 = vadd.f32 %v1967, %v1973
        %v1976 = vadd.f32 %v1968, %v1973
        %1977 = vst [vmem:[#allocation2] sm:$0xff] %v1975
        %1978 = vst [vmem:[#allocation2 + $0x8] sm:$0xff] %v1976
        %p1979 = scmp.eq.s32.totalorder %s33, 1
        // Predicated region
        $region109: #{tpu_custom_call.1} parent=75 // pred_check
          %p1980 = pneg %p1979
        $region110: #{tpu_custom_call.1} parent=75 // pred_check_branch
          %1982 = sbr.rel (%p1980) target = $region112
        $region111: #{tpu_custom_call.1} parent=75 // pred_region
          %v1983 = vpack.c.bf16 %v1975, %v1975
          %v1984 = vpack.c.bf16 %v1976, %v1976
          %1985 = vst [vmem:[#allocation13] sm:$0xf] %v1983
          %1986 = vst [vmem:[#allocation13 + $0x4] sm:$0xf] %v1984
        $region112: #{tpu_custom_call.1} parent=75 // pred_fallthru
          _
        // Predicated region
        $region113: #{tpu_custom_call.1} parent=75 // pred_check
          %p1987 = pneg %p422
        $region114: #{tpu_custom_call.1} parent=75 // pred_check_branch
          %1989 = sbr.rel (%p1987) target = $region116
        $region115: #{tpu_custom_call.1} parent=75 // pred_region
          %s1990 = smul.u32 2, %s32
          %s1992 = ssub.s32 128, 128
          %1993 = vsyncadd [#allocation5], %s1992
          %s1994 = smul.addr %s1990, 64
          %s1995 = scalar_lea.hbm %s14, %s1994
          %s1996 = sshll.u32 [#allocation13], 4
          %s1997 = int_to_ptr.vmem [resolvable:$true] %s1996
          %2002 = dma.vmem_to_hbm [thread:$0]  %s1997, 128, %s1995, [#allocation5], 64, 64, 4
        $region116: #{tpu_custom_call.1} parent=75 // pred_fallthru
          _
        // Predicated region
        $region117: #{tpu_custom_call.1} parent=75 // pred_check
          %p2003 = pneg %p422
        $region118: #{tpu_custom_call.1} parent=75 // pred_check_branch
          %2005 = sbr.rel (%p2003) target = $region120
        $region119: #{tpu_custom_call.1} parent=75 // pred_region
          %2006 = dma.done [#allocation5], 128
        $region120: #{tpu_custom_call.1} parent=75 // pred_fallthru
          _
      $region76: #{tpu_custom_call.1} parent=5 // pred_fallthru
        _
      %p2007 = scmp.le.s32.totalorder 2, %s23
      // Predicated region
      $region121: #{tpu_custom_call.1} parent=5 // pred_check
        %p2008 = pneg %p2007
      $region122: #{tpu_custom_call.1} parent=5 // pred_check_branch
        %2010 = sbr.rel (%p2008) target = $region124
      $region123: #{tpu_custom_call.1} parent=5 // pred_region
        %s2011 = ssub.s32 %s23, 2
      $region124: #{tpu_custom_call.1} parent=5 // pred_fallthru
        _
    $region6: #{tpu_custom_call.1} parent=1 // loop_footer
      %s27 = sadd.s32 1, %s23
    $region7: #{tpu_custom_call.1} parent=1 // loop_footer_branch
      %22 = sbr.rel target = $region3
    $region8: #{tpu_custom_call.1} parent=1 // loop_exit
      _
    %2012 = vsyncpa [#allocation4], 1
    %s2013 = scalar_lea.sflag [#allocation4], 1
    %2014 = vsyncpa %s2013, 1
    %2015 = vsyncpa [#allocation7], 1
    %2016 = vsyncpa [#allocation5], 1
    %s2017 = scalar_lea.sflag [#allocation5], 1
    %2018 = vsyncpa %s2017, 1

</llo_original>
